<compile_context>
chip_gen: v7x
topology: tpu7x:2x2x1
jax: 0.10.0
libtpu: 0.0.40
codegen_flags: <defaults>
</compile_context>

<pallas_src>
import functools

import jax
import jax.numpy as jnp
from jax import lax
from jax.experimental import pallas as pl
from jax.experimental.pallas import tpu as pltpu


def _carre_kernel(coef_ref, nvalid_ref, inten_ref, h_ref, out_ref, acc_ref,
                  *, rc, n_chunks, block_rows, ni):
    """Grid = (parallel core-chunk c, sequential accumulation step i).

    coef_ref  : SMEM (3,)  f32   -- 4*pi / wavelength_w (scalar-prefetched)
    nvalid_ref: SMEM (1,)  i32   -- true sample count N (for exact tail masking)
    inten_ref : VMEM (12, R, 128) f32, channel-major block
    h_ref     : VMEM (R, 128) f32
    out_ref   : VMEM (1, 1, 128) f32 per-lane partial sums for this core-chunk
    acc_ref   : VMEM (rc, 128) f32 scratch accumulator (persists over i)
    """
    c = pl.program_id(0)
    i = pl.program_id(1)

    @pl.when(i == 0)
    def _():
        acc_ref[...] = jnp.zeros_like(acc_ref)

    # Per-wavelength coefficients and true sample count (cheap SMEM scalar reads).
    coefs = (coef_ref[0], coef_ref[1], coef_ref[2])
    n_valid = nvalid_ref[0]

    # First padded-layout row handled by this grid step.
    block_base = (c * ni + i) * block_rows
    sub_ids = lax.broadcasted_iota(jnp.int32, (rc, 128), 0)
    lane_ids = lax.broadcasted_iota(jnp.int32, (rc, 128), 1)

    def body(ci, carry):
        r0 = pl.multiple_of(ci * rc, rc)
        h = h_ref[pl.ds(r0, rc), :]                        # (rc, 128) dense
        total = jnp.zeros((rc, 128), jnp.float32)
        for w in range(3):                                 # static unroll over wavelengths
            i1 = inten_ref[4 * w + 0, pl.ds(r0, rc), :]
            i2 = inten_ref[4 * w + 1, pl.ds(r0, rc), :]
            i3 = inten_ref[4 * w + 2, pl.ds(r0, rc), :]
            i4 = inten_ref[4 * w + 3, pl.ds(r0, rc), :]
            x = i1 - i3 + jnp.float32(1e-8)                # eps placement as in reference
            y = i4 - i2
            p = coefs[w] * h                               # pred phase (division hoisted)
            # cos(atan2(y, x) - p) == (x*cos p + y*sin p) / sqrt(x^2 + y^2)
            num = x * jnp.cos(p) + y * jnp.sin(p)
            inv_r = lax.rsqrt(x * x + y * y + jnp.float32(1e-30))  # guard x=y=0
            total = total + (jnp.float32(1.0) - num * inv_r)
        # Exact tail mask: padded samples contribute exactly 0 (VPU has slack here).
        sample_ids = (block_base + r0 + sub_ids) * 128 + lane_ids
        total = jnp.where(sample_ids < n_valid, total, jnp.float32(0.0))
        return carry + total                               # accumulate in vregs

    partial = lax.fori_loop(0, n_chunks, body, jnp.zeros((rc, 128), jnp.float32))
    acc_ref[...] += partial                                # one VMEM RMW per grid step

    @pl.when(i == pl.num_programs(1) - 1)
    def _():
        # Per-lane partial sums (lane-dense output); final reduce happens in the wrapper.
        out_ref[...] = jnp.sum(acc_ref[...], axis=0, keepdims=True)[None]


def _round_up(x, m):
    return ((x + m - 1) // m) * m


def _num_tensorcores_per_chip():
    """Best-effort TensorCores-per-chip (perf knob only; wrong guess is still correct)."""
    try:
        kind = jax.devices()[0].device_kind.lower()
    except Exception:
        return 1
    if ("lite" in kind) or ("v5e" in kind) or ("v6e" in kind) or ("v6" in kind):
        return 1                      # v5e / v6e: single TensorCore
    if ("v4" in kind) or ("v5p" in kind) or ("7" in kind):
        return 2                      # v4 / v5p megacore, v7x: 2 TensorCores
    return 1


def robust_physics_loss(predicted_height, original_intensities, wavelengths,
                        *, max_block_rows=1024, chunk_rows=32, channel_major=False):
    """JAX wrapper.

    predicted_height: (N,) or (N,1) f32.
    original_intensities: any shape with N*12 elements, sample-major (e.g. (N,3,4));
        or channel-major (12, N) / (3, 4, N) when channel_major=True (preferred: avoids
        the repack copy entirely).
    wavelengths: (3,) f32.  Returns scalar f32.
    """
    assert max_block_rows % chunk_rows == 0
    h = jnp.asarray(predicted_height, jnp.float32).reshape(-1)               # (N,)
    wl = jnp.asarray(wavelengths, jnp.float32).reshape(3)
    coef = (jnp.float32(4.0) * jnp.pi) / wl                                  # (3,) hoisted

    if channel_major:
        inten_cmaj = jnp.asarray(original_intensities, jnp.float32).reshape(12, -1)
        n = inten_cmaj.shape[1]
    else:
        inten = jnp.asarray(original_intensities, jnp.float32).reshape(-1, 12)
        n = inten.shape[0]
        inten_cmaj = inten.T           # fused with the pad below into ONE copy pass
    assert h.shape[0] == n

    # ---- tiling plan (padding bounded by < nc*chunk_rows*128 samples) -------
    nb = -(-n // 128)                                    # 128-sample lane groups
    num_tc = _num_tensorcores_per_chip()
    nc = 2 if (num_tc >= 2 and nb >= 2 * chunk_rows) else 1
    nb_per = -(-nb // nc)                                # rows per core-chunk
    ni = -(-nb_per // max_block_rows)                    # sequential steps per chunk
    r = _round_up(-(-nb_per // ni), chunk_rows)          # rows per grid step (<= max)
    nbtot = nc * ni * r
    npad = nbtot * 128

    # ---- single fused pad(+transpose) copy -> padded channel-major layout ---
    inten_cm = jnp.pad(inten_cmaj, ((0, 0), (0, npad - n))).reshape(12, nbtot, 128)
    h_cm = jnp.pad(h, (0, npad - n)).reshape(nbtot, 128)
    nvalid = jnp.array([n], jnp.int32)

    kernel = functools.partial(_carre_kernel, rc=chunk_rows,
                               n_chunks=r // chunk_rows, block_rows=r, ni=ni)

    out = pl.pallas_call(
        kernel,
        out_shape=jax.ShapeDtypeStruct((nc, 1, 128), jnp.float32),
        grid_spec=pltpu.PrefetchScalarGridSpec(
            num_scalar_prefetch=2,
            grid=(nc, ni),
            in_specs=[
                pl.BlockSpec((12, r, 128),
                             lambda c, i, coef_ref, nv_ref: (0, c * ni + i, 0)),
                pl.BlockSpec((r, 128),
                             lambda c, i, coef_ref, nv_ref: (c * ni + i, 0)),
            ],
            out_specs=pl.BlockSpec((1, 1, 128),
                                   lambda c, i, coef_ref, nv_ref: (c, 0, 0)),
            scratch_shapes=[pltpu.VMEM((chunk_rows, 128), jnp.float32)],
        ),
        compiler_params=pltpu.CompilerParams(
            dimension_semantics=("parallel", "arbitrary"),
            vmem_limit_bytes=32 * 1024 * 1024),
    )(coef, nvalid, inten_cm, h_cm)

    # sum over w of mean over N, divided by 3  ==  total_sum / (3 * N)
    return jnp.sum(out) / jnp.float32(3.0 * n)


def _reference(predicted_height, original_intensities, wavelengths):
    inten = jnp.asarray(original_intensities, jnp.float32).reshape(-1, 3, 4)
    h = jnp.asarray(predicted_height, jnp.float32).reshape(-1)
    total = 0.0
    for w in range(3):
        I = inten[:, w, :]
        actual = jnp.arctan2(I[:, 3] - I[:, 1], I[:, 0] - I[:, 2] + 1e-8)
        pred = 4 * jnp.pi * h / wavelengths[w]
        total = total + jnp.mean(1.0 - jnp.cos(actual - pred))
    return total / 3.0


if __name__ == "__main__":
    key = jax.random.PRNGKey(0)
    k1, k2 = jax.random.split(key)

    N = 250  # number of pixels/samples (not a multiple of 128 -> exercises padding/mask path)
    predicted_height = jax.random.uniform(k1, (N, 1), jnp.float32,
                                          minval=0.0, maxval=100.0)
    original_intensities = jax.random.uniform(k2, (N, 3, 4), jnp.float32,
                                              minval=0.0, maxval=1.0)
    wavelengths = jnp.array([450.0, 550.0, 650.0], jnp.float32)

    # NOTE: learnable_shifts exists in __init__ but is unused in the adaptive
    # (carre_loss) forward path; kept here only for documentation.
    learnable_shifts = jnp.array([0.0, jnp.pi / 2, jnp.pi, 3 * jnp.pi / 2],
                                 jnp.float32)

    loss = robust_physics_loss(predicted_height, original_intensities, wavelengths)
    loss = jax.block_until_ready(loss)

    ref = _reference(predicted_height, original_intensities, wavelengths)
    assert jnp.allclose(loss, ref, rtol=1e-5, atol=1e-5), (loss, ref)

    print("KERNEL_OK")
</pallas_src>

<mosaic_0001>
module attributes {stable_mosaic.version = 11 : i64} {
  func.func @_carre_kernel(%arg0: i32, %arg1: i32, %arg2: memref<3xf32, #tpu.memory_space<smem>>, %arg3: memref<1xi32, #tpu.memory_space<smem>>, %arg4: memref<12x32x128xf32, #tpu.memory_space<vmem>>, %arg5: memref<32x128xf32, #tpu.memory_space<vmem>>, %arg6: memref<1x1x128xf32, #tpu.memory_space<vmem>>, %arg7: memref<32x128xf32, #tpu.memory_space<vmem>>) attributes {dimension_semantics = [#tpu.dimension_semantics<parallel>, #tpu.dimension_semantics<arbitrary>], iteration_bounds = array<i64: 1, 1>, scalar_prefetch = 2 : i64, scratch_operands = 1 : i64, tpu.core_type = #tpu.core_type<tc>, window_params = [{transform_indices = @transform_0, window_bounds = array<i64: 12, 32, 128>}, {transform_indices = @transform_1, window_bounds = array<i64: 32, 128>}, {transform_indices = @transform_2, window_bounds = array<i64: 1, 1, 128>}]} {
    %c0_i32 = arith.constant 0 : i32
    %0 = arith.cmpi eq, %arg1, %c0_i32 : i32
    %1 = arith.extui %0 : i1 to i32
    %c0_i32_0 = arith.constant 0 : i32
    %2 = arith.cmpi ne, %1, %c0_i32_0 : i32
    scf.if %2 {
      %cst_38 = arith.constant 0.000000e+00 : f32
      %134 = vector.broadcast %cst_38 : f32 to vector<32x128xf32>
      %c0_39 = arith.constant 0 : index
      %c0_40 = arith.constant 0 : index
      %135 = vector.load %arg7[%c0_39, %c0_40] : memref<32x128xf32, #tpu.memory_space<vmem>>, vector<32x128xf32>
      tpu.vector_store %arg7[%c0_39, %c0_40], %134 {strides = array<i32>} : memref<32x128xf32, #tpu.memory_space<vmem>>, vector<32x128xf32>,
    } else {
    }
    %c0 = arith.constant 0 : index
    %3 = memref.load %arg2[%c0] : memref<3xf32, #tpu.memory_space<smem>>
    %c1 = arith.constant 1 : index
    %4 = memref.load %arg2[%c1] : memref<3xf32, #tpu.memory_space<smem>>
    %c2 = arith.constant 2 : index
    %5 = memref.load %arg2[%c2] : memref<3xf32, #tpu.memory_space<smem>>
    %c0_1 = arith.constant 0 : index
    %6 = memref.load %arg3[%c0_1] : memref<1xi32, #tpu.memory_space<smem>>
    %c1_i32 = arith.constant 1 : i32
    %7 = arith.muli %arg0, %c1_i32 : i32
    %8 = arith.addi %7, %arg1 : i32
    %c32_i32 = arith.constant 32 : i32
    %9 = arith.muli %8, %c32_i32 : i32
    %10 = tpu.iota {dimensions = array<i32: 0>} : vector<32x128xi32>
    %11 = tpu.iota {dimensions = array<i32: 1>} : vector<32x128xi32>
    %cst = arith.constant 0.000000e+00 : f32
    %12 = vector.broadcast %cst : f32 to vector<32x128xf32>
    %c0_i32_2 = arith.constant 0 : i32
    %c32_i32_3 = arith.constant 32 : i32
    %13 = arith.muli %c0_i32_2, %c32_i32_3 : i32
    %14 = tpu.assume_multiple %13, 32 : i32
    %15 = arith.index_cast %14 : i32 to index
    %c0_4 = arith.constant 0 : index
    %16 = vector.load %arg5[%15, %c0_4] : memref<32x128xf32, #tpu.memory_space<vmem>>, vector<32x128xf32>
    %cst_5 = arith.constant 0.000000e+00 : f32
    %17 = vector.broadcast %cst_5 : f32 to vector<32x128xf32>
    %c0_6 = arith.constant 0 : index
    %18 = arith.index_cast %14 : i32 to index
    %c0_7 = arith.constant 0 : index
    %19 = vector.load %arg4[%c0_6, %18, %c0_7] : memref<12x32x128xf32, #tpu.memory_space<vmem>>, vector<1x32x128xf32>
    %20 = vector.shape_cast %19 : vector<1x32x128xf32> to vector<32x128xf32>
    %c1_8 = arith.constant 1 : index
    %21 = arith.index_cast %14 : i32 to index
    %c0_9 = arith.constant 0 : index
    %22 = vector.load %arg4[%c1_8, %21, %c0_9] : memref<12x32x128xf32, #tpu.memory_space<vmem>>, vector<1x32x128xf32>
    %23 = vector.shape_cast %22 : vector<1x32x128xf32> to vector<32x128xf32>
    %c2_10 = arith.constant 2 : index
    %24 = arith.index_cast %14 : i32 to index
    %c0_11 = arith.constant 0 : index
    %25 = vector.load %arg4[%c2_10, %24, %c0_11] : memref<12x32x128xf32, #tpu.memory_space<vmem>>, vector<1x32x128xf32>
    %26 = vector.shape_cast %25 : vector<1x32x128xf32> to vector<32x128xf32>
    %c3 = arith.constant 3 : index
    %27 = arith.index_cast %14 : i32 to index
    %c0_12 = arith.constant 0 : index
    %28 = vector.load %arg4[%c3, %27, %c0_12] : memref<12x32x128xf32, #tpu.memory_space<vmem>>, vector<1x32x128xf32>
    %29 = vector.shape_cast %28 : vector<1x32x128xf32> to vector<32x128xf32>
    %30 = arith.subf %20, %26 : vector<32x128xf32>
    %cst_13 = arith.constant 9.99999993E-9 : f32
    %31 = vector.broadcast %cst_13 : f32 to vector<32x128xf32>
    %32 = arith.addf %30, %31 : vector<32x128xf32>
    %33 = arith.subf %29, %23 : vector<32x128xf32>
    %34 = vector.broadcast %3 : f32 to vector<32x128xf32>
    %35 = arith.mulf %34, %16 : vector<32x128xf32>
    %36 = math.cos %35 : vector<32x128xf32>
    %37 = arith.mulf %32, %36 : vector<32x128xf32>
    %38 = math.sin %35 : vector<32x128xf32>
    %39 = arith.mulf %33, %38 : vector<32x128xf32>
    %40 = arith.addf %37, %39 : vector<32x128xf32>
    %41 = arith.mulf %32, %32 : vector<32x128xf32>
    %42 = arith.mulf %33, %33 : vector<32x128xf32>
    %43 = arith.addf %41, %42 : vector<32x128xf32>
    %cst_14 = arith.constant 1.000000e-30 : f32
    %44 = vector.broadcast %cst_14 : f32 to vector<32x128xf32>
    %45 = arith.addf %43, %44 : vector<32x128xf32>
    %46 = math.rsqrt %45 : vector<32x128xf32>
    %47 = arith.mulf %40, %46 : vector<32x128xf32>
    %cst_15 = arith.constant 1.000000e+00 : f32
    %48 = vector.broadcast %cst_15 : f32 to vector<32x128xf32>
    %49 = arith.subf %48, %47 : vector<32x128xf32>
    %50 = arith.addf %17, %49 : vector<32x128xf32>
    %c4 = arith.constant 4 : index
    %51 = arith.index_cast %14 : i32 to index
    %c0_16 = arith.constant 0 : index
    %52 = vector.load %arg4[%c4, %51, %c0_16] : memref<12x32x128xf32, #tpu.memory_space<vmem>>, vector<1x32x128xf32>
    %53 = vector.shape_cast %52 : vector<1x32x128xf32> to vector<32x128xf32>
    %c5 = arith.constant 5 : index
    %54 = arith.index_cast %14 : i32 to index
    %c0_17 = arith.constant 0 : index
    %55 = vector.load %arg4[%c5, %54, %c0_17] : memref<12x32x128xf32, #tpu.memory_space<vmem>>, vector<1x32x128xf32>
    %56 = vector.shape_cast %55 : vector<1x32x128xf32> to vector<32x128xf32>
    %c6 = arith.constant 6 : index
    %57 = arith.index_cast %14 : i32 to index
    %c0_18 = arith.constant 0 : index
    %58 = vector.load %arg4[%c6, %57, %c0_18] : memref<12x32x128xf32, #tpu.memory_space<vmem>>, vector<1x32x128xf32>
    %59 = vector.shape_cast %58 : vector<1x32x128xf32> to vector<32x128xf32>
    %c7 = arith.constant 7 : index
    %60 = arith.index_cast %14 : i32 to index
    %c0_19 = arith.constant 0 : index
    %61 = vector.load %arg4[%c7, %60, %c0_19] : memref<12x32x128xf32, #tpu.memory_space<vmem>>, vector<1x32x128xf32>
    %62 = vector.shape_cast %61 : vector<1x32x128xf32> to vector<32x128xf32>
    %63 = arith.subf %53, %59 : vector<32x128xf32>
    %cst_20 = arith.constant 9.99999993E-9 : f32
    %64 = vector.broadcast %cst_20 : f32 to vector<32x128xf32>
    %65 = arith.addf %63, %64 : vector<32x128xf32>
    %66 = arith.subf %62, %56 : vector<32x128xf32>
    %67 = vector.broadcast %4 : f32 to vector<32x128xf32>
    %68 = arith.mulf %67, %16 : vector<32x128xf32>
    %69 = math.cos %68 : vector<32x128xf32>
    %70 = arith.mulf %65, %69 : vector<32x128xf32>
    %71 = math.sin %68 : vector<32x128xf32>
    %72 = arith.mulf %66, %71 : vector<32x128xf32>
    %73 = arith.addf %70, %72 : vector<32x128xf32>
    %74 = arith.mulf %65, %65 : vector<32x128xf32>
    %75 = arith.mulf %66, %66 : vector<32x128xf32>
    %76 = arith.addf %74, %75 : vector<32x128xf32>
    %cst_21 = arith.constant 1.000000e-30 : f32
    %77 = vector.broadcast %cst_21 : f32 to vector<32x128xf32>
    %78 = arith.addf %76, %77 : vector<32x128xf32>
    %79 = math.rsqrt %78 : vector<32x128xf32>
    %80 = arith.mulf %73, %79 : vector<32x128xf32>
    %cst_22 = arith.constant 1.000000e+00 : f32
    %81 = vector.broadcast %cst_22 : f32 to vector<32x128xf32>
    %82 = arith.subf %81, %80 : vector<32x128xf32>
    %83 = arith.addf %50, %82 : vector<32x128xf32>
    %c8 = arith.constant 8 : index
    %84 = arith.index_cast %14 : i32 to index
    %c0_23 = arith.constant 0 : index
    %85 = vector.load %arg4[%c8, %84, %c0_23] : memref<12x32x128xf32, #tpu.memory_space<vmem>>, vector<1x32x128xf32>
    %86 = vector.shape_cast %85 : vector<1x32x128xf32> to vector<32x128xf32>
    %c9 = arith.constant 9 : index
    %87 = arith.index_cast %14 : i32 to index
    %c0_24 = arith.constant 0 : index
    %88 = vector.load %arg4[%c9, %87, %c0_24] : memref<12x32x128xf32, #tpu.memory_space<vmem>>, vector<1x32x128xf32>
    %89 = vector.shape_cast %88 : vector<1x32x128xf32> to vector<32x128xf32>
    %c10 = arith.constant 10 : index
    %90 = arith.index_cast %14 : i32 to index
    %c0_25 = arith.constant 0 : index
    %91 = vector.load %arg4[%c10, %90, %c0_25] : memref<12x32x128xf32, #tpu.memory_space<vmem>>, vector<1x32x128xf32>
    %92 = vector.shape_cast %91 : vector<1x32x128xf32> to vector<32x128xf32>
    %c11 = arith.constant 11 : index
    %93 = arith.index_cast %14 : i32 to index
    %c0_26 = arith.constant 0 : index
    %94 = vector.load %arg4[%c11, %93, %c0_26] : memref<12x32x128xf32, #tpu.memory_space<vmem>>, vector<1x32x128xf32>
    %95 = vector.shape_cast %94 : vector<1x32x128xf32> to vector<32x128xf32>
    %96 = arith.subf %86, %92 : vector<32x128xf32>
    %cst_27 = arith.constant 9.99999993E-9 : f32
    %97 = vector.broadcast %cst_27 : f32 to vector<32x128xf32>
    %98 = arith.addf %96, %97 : vector<32x128xf32>
    %99 = arith.subf %95, %89 : vector<32x128xf32>
    %100 = vector.broadcast %5 : f32 to vector<32x128xf32>
    %101 = arith.mulf %100, %16 : vector<32x128xf32>
    %102 = math.cos %101 : vector<32x128xf32>
    %103 = arith.mulf %98, %102 : vector<32x128xf32>
    %104 = math.sin %101 : vector<32x128xf32>
    %105 = arith.mulf %99, %104 : vector<32x128xf32>
    %106 = arith.addf %103, %105 : vector<32x128xf32>
    %107 = arith.mulf %98, %98 : vector<32x128xf32>
    %108 = arith.mulf %99, %99 : vector<32x128xf32>
    %109 = arith.addf %107, %108 : vector<32x128xf32>
    %cst_28 = arith.constant 1.000000e-30 : f32
    %110 = vector.broadcast %cst_28 : f32 to vector<32x128xf32>
    %111 = arith.addf %109, %110 : vector<32x128xf32>
    %112 = math.rsqrt %111 : vector<32x128xf32>
    %113 = arith.mulf %106, %112 : vector<32x128xf32>
    %cst_29 = arith.constant 1.000000e+00 : f32
    %114 = vector.broadcast %cst_29 : f32 to vector<32x128xf32>
    %115 = arith.subf %114, %113 : vector<32x128xf32>
    %116 = arith.addf %83, %115 : vector<32x128xf32>
    %117 = arith.addi %9, %14 : i32
    %118 = vector.broadcast %117 : i32 to vector<32x128xi32>
    %119 = arith.addi %118, %10 : vector<32x128xi32>
    %c128_i32 = arith.constant 128 : i32
    %120 = vector.broadcast %c128_i32 : i32 to vector<32x128xi32>
    %121 = arith.muli %119, %120 : vector<32x128xi32>
    %122 = arith.addi %121, %11 : vector<32x128xi32>
    %123 = vector.broadcast %6 : i32 to vector<32x128xi32>
    %124 = arith.cmpi slt, %122, %123 : vector<32x128xi32>
    %cst_30 = arith.constant 0.000000e+00 : f32
    %125 = vector.broadcast %cst_30 : f32 to vector<32x128xf32>
    %126 = arith.select %124, %116, %125 : vector<32x128xi1>, vector<32x128xf32>
    %127 = arith.addf %12, %126 : vector<32x128xf32>
    %c1_i32_31 = arith.constant 1 : i32
    %c0_32 = arith.constant 0 : index
    %c0_33 = arith.constant 0 : index
    %128 = vector.load %arg7[%c0_32, %c0_33] : memref<32x128xf32, #tpu.memory_space<vmem>>, vector<32x128xf32>
    %129 = arith.addf %128, %127 : vector<32x128xf32>
    %c0_34 = arith.constant 0 : index
    %c0_35 = arith.constant 0 : index
    %130 = vector.load %arg7[%c0_34, %c0_35] : memref<32x128xf32, #tpu.memory_space<vmem>>, vector<32x128xf32>
    tpu.vector_store %arg7[%c0_34, %c0_35], %129 {strides = array<i32>} : memref<32x128xf32, #tpu.memory_space<vmem>>, vector<32x128xf32>,
    %c0_i32_36 = arith.constant 0 : i32
    %131 = arith.cmpi eq, %arg1, %c0_i32_36 : i32
    %132 = arith.extui %131 : i1 to i32
    %c0_i32_37 = arith.constant 0 : i32
    %133 = arith.cmpi ne, %132, %c0_i32_37 : i32
    scf.if %133 {
      %c0_38 = arith.constant 0 : index
      %c0_39 = arith.constant 0 : index
      %134 = vector.load %arg7[%c0_38, %c0_39] : memref<32x128xf32, #tpu.memory_space<vmem>>, vector<32x128xf32>
      %cst_40 = arith.constant dense<0.000000e+00> : vector<128xf32>
      %135 = vector.multi_reduction <add>, %134, %cst_40 [0] : vector<32x128xf32> to vector<128xf32>
      %136 = vector.shape_cast %135 : vector<128xf32> to vector<1x128xf32>
      %137 = vector.shape_cast %136 : vector<1x128xf32> to vector<1x1x128xf32>
      %c0_41 = arith.constant 0 : index
      %c0_42 = arith.constant 0 : index
      %c0_43 = arith.constant 0 : index
      %138 = vector.load %arg6[%c0_41, %c0_42, %c0_43] : memref<1x1x128xf32, #tpu.memory_space<vmem>>, vector<1x1x128xf32>
      tpu.vector_store %arg6[%c0_41, %c0_42, %c0_43], %137 {strides = array<i32>} : memref<1x1x128xf32, #tpu.memory_space<vmem>>, vector<1x1x128xf32>,
    } else {
    }
    return
  }
  func.func @transform_0(%arg0: i32, %arg1: i32, %arg2: memref<3xf32, #tpu.memory_space<smem>>, %arg3: memref<1xi32, #tpu.memory_space<smem>>) -> (i32, i32, i32) {
    %c1_i32 = arith.constant 1 : i32
    %0 = arith.muli %arg0, %c1_i32 : i32
    %1 = arith.addi %0, %arg1 : i32
    %c0_i32 = arith.constant 0 : i32
    %c0_i32_0 = arith.constant 0 : i32
    %c0_i32_1 = arith.constant 0 : i32
    return %c0_i32, %1, %c0_i32_0 : i32, i32, i32
  }
  func.func @transform_1(%arg0: i32, %arg1: i32, %arg2: memref<3xf32, #tpu.memory_space<smem>>, %arg3: memref<1xi32, #tpu.memory_space<smem>>) -> (i32, i32) {
    %c1_i32 = arith.constant 1 : i32
    %0 = arith.muli %arg0, %c1_i32 : i32
    %1 = arith.addi %0, %arg1 : i32
    %c0_i32 = arith.constant 0 : i32
    %c0_i32_0 = arith.constant 0 : i32
    return %1, %c0_i32 : i32, i32
  }
  func.func @transform_2(%arg0: i32, %arg1: i32, %arg2: memref<3xf32, #tpu.memory_space<smem>>, %arg3: memref<1xi32, #tpu.memory_space<smem>>) -> (i32, i32, i32) {
    %c0_i32 = arith.constant 0 : i32
    %c0_i32_0 = arith.constant 0 : i32
    %c0_i32_1 = arith.constant 0 : i32
    return %arg0, %c0_i32, %c0_i32_0 : i32, i32, i32
  }
}

</mosaic_0001>

<llo_original>
// kernel: tpu_custom_call.1
$region0: #{tpu_custom_call.1}
  #allocation0 [shape = 'u32[]', space=smem, size = 0x4, offset = 0x4, fixed_abs, tag = 'smem constant byte address 0x4 - core index']
  #allocation1 [shape = 'u32[144,128]{1,0:T(1,128)}', space=vmem, size = 0x12000, scoped, tag = 'internal scratch']
  #allocation2 [shape = 'f32[32,128]{1,0:T(8,128)}', space=vmem, size = 0x4000, scoped, tag = 'scratch operand']
  #allocation3 [shape = 's32[1]{0}', space=sflag, size = 0x4, scoped, tag = 'scoped memory for tpu_custom_call.1']
  #allocation4 [shape = 'u8[512]{0}', space=smem, size = 0x200, scoped, tag = 'prefetched SMEM operand 0']
  #allocation5 [shape = 's32[1]{0:T(128)S(6)}', space=smem, size = 0x200, scoped, tag = 'prefetched SMEM operand 1']
  %s0 = inlined_call_operand.vmem [shape: f32[3], index: 0, kind: input, shape index: {}]
  %s1 = inlined_call_operand.<no memory space> [shape: s32[1], index: 1, kind: input, shape index: {}]
  %s2 = inlined_call_operand.hbm [shape: f32[12,32,128], index: 2, kind: input, shape index: {}]
  %s3 = inlined_call_operand.hbm [shape: f32[32,128], index: 3, kind: input, shape index: {}]
  %s4 = inlined_call_operand.hbm [shape: f32[1,1,128], index: 4, kind: output, shape index: {}]
  %s5 = sld [smem:[#allocation0]]
  $region34: #{tpu_custom_call.1} parent=0
    _
  %s7 = ssub.s32 1, %s5
  %s8 = scalar_select 0, %s7, %s5
  %s9 = sshll.u32 %s0, 4
  %s10 = int_to_ptr.vmem [resolvable:$true] %s9
  %12 = dma.vmem_to_smem %s10, 16, [#allocation4], [#allocation3]
  %13 = sst [smem:[#allocation5]] %s1
  %14 = dma.done [#allocation3], 16
  %15 = sfence
  $region1: #{tpu_custom_call.1} parent=0
    #allocation6 [shape = 'u8[196608]{0}', space=vmem, size = 0x30000, scoped, tag = 'input window, operand 2, single buffered']
    #allocation7 [shape = 's32[1]{0}', space=sflag, size = 0x4, scoped, tag = 'scoped memory for tpu_custom_call.1']
    #allocation8 [shape = 's32[1]{0}', space=sflag, size = 0x4, scoped, tag = 'scoped memory for tpu_custom_call.1']
    #allocation9 [shape = 'u8[16384]{0}', space=vmem, size = 0x4000, scoped, tag = 'input window, operand 3, single buffered']
    #allocation10 [shape = 's32[1]{0}', space=sflag, size = 0x4, scoped, tag = 'scoped memory for tpu_custom_call.1']
    #allocation11 [shape = 'u8[512]{0}', space=vmem, size = 0x400, scoped, tag = 'output window, operand 0, single buffered']
    %16 = vsyncpa [#allocation7], 0
    %17 = vsyncpa [#allocation10], 0
    %18 = vsyncpa [#allocation8], 0
    // Predicated region
    $region2: #{tpu_custom_call.1} parent=1 // pred_check
      _
    $region3: #{tpu_custom_call.1} parent=1 // pred_check_branch
      %20 = sbr.rel (0) target = $region5
    $region4: #{tpu_custom_call.1} parent=1 // pred_region
      %s21 = sadd.s32 0, 0
      %s22 = smul.u32 4, %s21
      %s24 = ssub.s32 6144, 6144
      %25 = vsyncadd [#allocation7], %s24
      %s26 = smul.addr %s22, 128
      %s27 = scalar_lea.hbm %s2, %s26
      %s28 = sshll.u32 [#allocation6], 4
      %s29 = int_to_ptr.vmem [resolvable:$true] %s28
      %34 = dma.hbm_to_vmem [thread:$0]  %s27, 6144, %s29, [#allocation7], 128, 128, 8
    $region5: #{tpu_custom_call.1} parent=1 // pred_fallthru
      _
    // Predicated region
    $region6: #{tpu_custom_call.1} parent=1 // pred_check
      _
    $region7: #{tpu_custom_call.1} parent=1 // pred_check_branch
      %36 = sbr.rel (0) target = $region9
    $region8: #{tpu_custom_call.1} parent=1 // pred_region
      %s37 = sadd.s32 0, 0
      %s38 = smul.u32 4, %s37
      %s40 = ssub.s32 512, 512
      %41 = vsyncadd [#allocation10], %s40
      %s42 = smul.addr %s38, 128
      %s43 = scalar_lea.hbm %s3, %s42
      %s44 = sshll.u32 [#allocation9], 4
      %s45 = int_to_ptr.vmem [resolvable:$true] %s44
      %50 = dma.hbm_to_vmem [thread:$0]  %s43, 512, %s45, [#allocation10], 128, 128, 8
    $region9: #{tpu_custom_call.1} parent=1 // pred_fallthru
      _
    // Predicated region
    $region10: #{tpu_custom_call.1} parent=1 // pred_check
      _
    $region11: #{tpu_custom_call.1} parent=1 // pred_check_branch
      %52 = sbr.rel (0) target = $region13
    $region12: #{tpu_custom_call.1} parent=1 // pred_region
      %53 = dma.done [#allocation7], 6144
    $region13: #{tpu_custom_call.1} parent=1 // pred_fallthru
      _
    // Predicated region
    $region14: #{tpu_custom_call.1} parent=1 // pred_check
      _
    $region15: #{tpu_custom_call.1} parent=1 // pred_check_branch
      %55 = sbr.rel (0) target = $region17
    $region16: #{tpu_custom_call.1} parent=1 // pred_region
      %56 = dma.done [#allocation10], 512
    $region17: #{tpu_custom_call.1} parent=1 // pred_fallthru
      _
    %s57 = sadd.s32 0, 0
    %s58 = smul.u32 4, %s57
    %s59 = sadd.s32 0, 0
    %s60 = smul.u32 4, %s59
    %p61 = scmp.eq.s32.totalorder 0, 0
    // Predicated region
    $region18: #{tpu_custom_call.1} parent=1 // pred_check
      %p62 = pneg %p61
    $region19: #{tpu_custom_call.1} parent=1 // pred_check_branch
      %64 = sbr.rel (%p62) target = $region21
    $region20: #{tpu_custom_call.1} parent=1 // pred_region
      %65 = vst [vmem:[#allocation2] sm:$0xff] 0.0
      %66 = vst [vmem:[#allocation2 + $0x8] sm:$0xff] 0.0
      %67 = vst [vmem:[#allocation2 + $0x10] sm:$0xff] 0.0
      %68 = vst [vmem:[#allocation2 + $0x18] sm:$0xff] 0.0
    $region21: #{tpu_custom_call.1} parent=1 // pred_fallthru
      _
    %s69 = sld [smem:[#allocation4]]
    %s70 = sld [smem:[#allocation4 + $0x1]]
    %s71 = sld [smem:[#allocation4 + $0x2]]
    %s72 = sld [smem:[#allocation5]]
    %s73 = sadd.s32 0, 0
    %s74 = smul.u32 %s73, 32
    %v75 = vlaneseq
    %v76 = vshrl.u32 %v75, 7
    %v77 = vadd.s32 %v76, 8
    %v78 = vadd.s32 %v76, 16
    %v79 = vadd.s32 %v76, 24
    %v80 = vlaneseq
    %v81 = vand.u32 %v80, 127
    %v82 = vld [vmem:[#allocation9] sm:$0xff]
    %v83 = vld [vmem:[#allocation9 + $0x8] sm:$0xff]
    %v84 = vld [vmem:[#allocation9 + $0x10] sm:$0xff]
    %v85 = vld [vmem:[#allocation9 + $0x18] sm:$0xff]
    %v86 = vld [vmem:[#allocation6] sm:$0xff]
    %v87 = vld [vmem:[#allocation6 + $0x8] sm:$0xff]
    %v88 = vld [vmem:[#allocation6 + $0x10] sm:$0xff]
    %v89 = vld [vmem:[#allocation6 + $0x18] sm:$0xff]
    %s90 = sadd.s32 0, 32
    %s91 = scalar_lea.vmem [#allocation6], %s90
    %v92 = vld [vmem:[%s91] sm:$0xff]
    %v93 = vld [vmem:[%s91 + $0x8] sm:$0xff]
    %v94 = vld [vmem:[%s91 + $0x10] sm:$0xff]
    %v95 = vld [vmem:[%s91 + $0x18] sm:$0xff]
    %s96 = sadd.s32 0, 64
    %s97 = scalar_lea.vmem [#allocation6], %s96
    %v98 = vld [vmem:[%s97] sm:$0xff]
    %v99 = vld [vmem:[%s97 + $0x8] sm:$0xff]
    %v100 = vld [vmem:[%s97 + $0x10] sm:$0xff]
    %v101 = vld [vmem:[%s97 + $0x18] sm:$0xff]
    %s102 = sadd.s32 0, 96
    %s103 = scalar_lea.vmem [#allocation6], %s102
    %v104 = vld [vmem:[%s103] sm:$0xff]
    %v105 = vld [vmem:[%s103 + $0x8] sm:$0xff]
    %v106 = vld [vmem:[%s103 + $0x10] sm:$0xff]
    %v107 = vld [vmem:[%s103 + $0x18] sm:$0xff]
    %v108 = vsub.f32 %v86, %v98
    %v109 = vsub.f32 %v87, %v99
    %v110 = vsub.f32 %v88, %v100
    %v111 = vsub.f32 %v89, %v101
    %v112 = vadd.f32 %v108, 1e-08
    %v113 = vadd.f32 %v109, 1e-08
    %v114 = vadd.f32 %v110, 1e-08
    %v115 = vadd.f32 %v111, 1e-08
    %v116 = vsub.f32 %v104, %v92
    %v117 = vsub.f32 %v105, %v93
    %v118 = vsub.f32 %v106, %v94
    %v119 = vsub.f32 %v107, %v95
    %v120 = vstv %s69
    %v121 = vmul.f32 %v120, %v82
    %v122 = vmul.f32 %v120, %v83
    %v123 = vmul.f32 %v120, %v84
    %v124 = vmul.f32 %v120, %v85
    %v125 = vand.u32 2147483647, %v121
    %vm126 = vcmp.le.f32.partialorder %v125, 0.7853982
    %vm127 = vcmp.lt.s32.totalorder %v121, 0
    %v128 = vand.u32 %v121, 2139095040
    %v129 = vshrl.u32 %v128, 23
    %v130 = vsub.s32 %v129, 127
    %v131 = vand.u32 2147483647, %v121
    %v132 = vand.u32 %v131, 8388607
    %v133 = vor.u32 %v132, 8388608
    %v134 = vsub.s32 0, %v133
    %v135 = vadd.s32 %v130, 1
    %vm136 = vcmp.gt.s32.totalorder %v135, 0
    %v137 = vsel %vm136, %v135, 0
    %v138 = vshrl.u32 %v137, 5
    %v139 = vand.u32 %v137, 31
    %v140 = vsub.s32 32, %v139
    %v141 = vshrl.u32 683565275, %v140
    %v142 = vshll.u32 683565275, %v139
    %v143 = vshrl.u32 2475754826, %v140
    %v144 = vor.u32 %v142, %v143
    %v145 = vshll.u32 2475754826, %v139
    %v146 = vshrl.u32 2131351028, %v140
    %v147 = vor.u32 %v145, %v146
    %v148 = vshll.u32 2131351028, %v139
    %v149 = vshrl.u32 2102212464, %v140
    %v150 = vor.u32 %v148, %v149
    %v151 = vshll.u32 2102212464, %v139
    %v152 = vshrl.u32 920167782, %v140
    %v153 = vor.u32 %v151, %v152
    %v154 = vshll.u32 920167782, %v139
    %v155 = vshrl.u32 1326507024, %v140
    %v156 = vor.u32 %v154, %v155
    %vm157 = vcmp.lt.s32.totalorder %v138, 1
    %vm158 = vcmp.lt.s32.totalorder %v138, 2
    %vm159 = vcmp.lt.s32.totalorder %v138, 3
    %vm160 = vcmp.lt.s32.totalorder %v138, 4
    %v161 = vsel %vm157, %v141, %v144
    %v162 = vsel %vm160, %v150, 2102212464
    %v163 = vsel %vm159, %v147, %v162
    %v164 = vsel %vm158, %v161, %v163
    %v165 = vsel %vm157, %v144, %v147
    %v166 = vsel %vm160, %v153, 920167782
    %v167 = vsel %vm159, %v150, %v166
    %v168 = vsel %vm158, %v165, %v167
    %v169 = vsel %vm157, %v147, %v150
    %v170 = vsel %vm160, %v156, 1326507024
    %v171 = vsel %vm159, %v153, %v170
    %v172 = vsel %vm158, %v169, %v171
    %v173 = vshll.u32 %v133, 8
    %v174 = vmul.u32.u64.compose %v173, %v172
    %v175 = vextract.low.u32 %v174
    %v176 = vextract.high.u32 %v174
    %v177 = vmul.u32.u64.compose %v173, %v168
    %v178 = vextract.low.u32 %v177
    %v179 = vextract.high.u32 %v177
    %v180 = vmul.u32 %v173, %v164
    %v181 = vadd.s32 %v176, %v178
    %vm182 = vc.u32 %v176, %v178
    %v183 = vadd.s32 %v179, 1
    %v184 = vsel %vm182, %v183, %v179
    %v185 = vadd.s32 %v180, %v184
    %v186 = vadd.s32 %v185, 536870912
    %v187 = vshrl.u32 %v186, 30
    %v188 = vshll.u32 %v187, 30
    %v189 = vsub.s32 %v185, %v188
    %vm190 = vcmp.lt.s32.totalorder %v189, 0
    %v191 = vsub.s32 0, %v189
    %v192 = vsel %vm190, %v191, %v189
    %v193 = vclz %v192
    %v194 = vsub.s32 %v193, 2
    %vm195 = vcmp.gt.s32.totalorder 0, %v194
    %v196 = vsel %vm195, 0, %v194
    %v197 = vsub.s32 32, %v196
    %v198 = vshll.u32 %v189, %v196
    %v199 = vshrl.u32 %v181, %v197
    %v200 = vor.u32 %v198, %v199
    %v201 = vsub.s32 4294967266, %v196
    %v202 = vadd.s32 %v201, 127
    %v203 = vshll.u32 %v202, 23
    %v204 = vor.u32 4788187, %v203
    %v205 = vand.u32 2147483647, %v204
    %v207 = vcvt.s32.f32 %v200
    %v208 = vmul.f32 %v207, %v205
    %v209 = vxor.u32 %v208, 2147483648
    %v210 = vsel %vm127, %v209, %v208
    %v211 = vsub.s32 4, %v187
    %v212 = vsel %vm127, %v211, %v187
    %v213 = vsel %vm126, %v121, %v210
    %v214 = vsel %vm126, 0, %v212
    %v215 = vcosq.f32.pop %v213
    %v216 = vsinq.f32.pop %v213
    %vm217 = vweird.f32 %v121
    %v218 = vand.u32 %v214, 3
    %vm219 = vcmp.lt.s32.totalorder %v218, 2
    %vm220 = vcmp.eq.s32.totalorder %v218, 0
    %v221 = vxor.u32 %v216, 2147483648
    %v222 = vsel %vm220, %v215, %v221
    %vm223 = vcmp.eq.s32.totalorder %v218, 2
    %v224 = vxor.u32 %v215, 2147483648
    %v225 = vsel %vm223, %v224, %v216
    %v226 = vsel %vm219, %v222, %v225
    %v227 = vsel %vm217, nan, %v226
    %v228 = vand.u32 2147483647, %v122
    %vm229 = vcmp.le.f32.partialorder %v228, 0.7853982
    %vm230 = vcmp.lt.s32.totalorder %v122, 0
    %v231 = vand.u32 %v122, 2139095040
    %v232 = vshrl.u32 %v231, 23
    %v233 = vsub.s32 %v232, 127
    %v234 = vand.u32 2147483647, %v122
    %v235 = vand.u32 %v234, 8388607
    %v236 = vor.u32 %v235, 8388608
    %v237 = vsub.s32 0, %v236
    %v238 = vadd.s32 %v233, 1
    %vm239 = vcmp.gt.s32.totalorder %v238, 0
    %v240 = vsel %vm239, %v238, 0
    %v241 = vshrl.u32 %v240, 5
    %v242 = vand.u32 %v240, 31
    %v243 = vsub.s32 32, %v242
    %v244 = vshrl.u32 683565275, %v243
    %v245 = vshll.u32 683565275, %v242
    %v246 = vshrl.u32 2475754826, %v243
    %v247 = vor.u32 %v245, %v246
    %v248 = vshll.u32 2475754826, %v242
    %v249 = vshrl.u32 2131351028, %v243
    %v250 = vor.u32 %v248, %v249
    %v251 = vshll.u32 2131351028, %v242
    %v252 = vshrl.u32 2102212464, %v243
    %v253 = vor.u32 %v251, %v252
    %v254 = vshll.u32 2102212464, %v242
    %v255 = vshrl.u32 920167782, %v243
    %v256 = vor.u32 %v254, %v255
    %v257 = vshll.u32 920167782, %v242
    %v258 = vshrl.u32 1326507024, %v243
    %v259 = vor.u32 %v257, %v258
    %vm260 = vcmp.lt.s32.totalorder %v241, 1
    %vm261 = vcmp.lt.s32.totalorder %v241, 2
    %vm262 = vcmp.lt.s32.totalorder %v241, 3
    %vm263 = vcmp.lt.s32.totalorder %v241, 4
    %v264 = vsel %vm260, %v244, %v247
    %v265 = vsel %vm263, %v253, 2102212464
    %v266 = vsel %vm262, %v250, %v265
    %v267 = vsel %vm261, %v264, %v266
    %v268 = vsel %vm260, %v247, %v250
    %v269 = vsel %vm263, %v256, 920167782
    %v270 = vsel %vm262, %v253, %v269
    %v271 = vsel %vm261, %v268, %v270
    %v272 = vsel %vm260, %v250, %v253
    %v273 = vsel %vm263, %v259, 1326507024
    %v274 = vsel %vm262, %v256, %v273
    %v275 = vsel %vm261, %v272, %v274
    %v276 = vshll.u32 %v236, 8
    %v277 = vmul.u32.u64.compose %v276, %v275
    %v278 = vextract.low.u32 %v277
    %v279 = vextract.high.u32 %v277
    %v280 = vmul.u32.u64.compose %v276, %v271
    %v281 = vextract.low.u32 %v280
    %v282 = vextract.high.u32 %v280
    %v283 = vmul.u32 %v276, %v267
    %v284 = vadd.s32 %v279, %v281
    %vm285 = vc.u32 %v279, %v281
    %v286 = vadd.s32 %v282, 1
    %v287 = vsel %vm285, %v286, %v282
    %v288 = vadd.s32 %v283, %v287
    %v289 = vadd.s32 %v288, 536870912
    %v290 = vshrl.u32 %v289, 30
    %v291 = vshll.u32 %v290, 30
    %v292 = vsub.s32 %v288, %v291
    %vm293 = vcmp.lt.s32.totalorder %v292, 0
    %v294 = vsub.s32 0, %v292
    %v295 = vsel %vm293, %v294, %v292
    %v296 = vclz %v295
    %v297 = vsub.s32 %v296, 2
    %vm298 = vcmp.gt.s32.totalorder 0, %v297
    %v299 = vsel %vm298, 0, %v297
    %v300 = vsub.s32 32, %v299
    %v301 = vshll.u32 %v292, %v299
    %v302 = vshrl.u32 %v284, %v300
    %v303 = vor.u32 %v301, %v302
    %v304 = vsub.s32 4294967266, %v299
    %v305 = vadd.s32 %v304, 127
    %v306 = vshll.u32 %v305, 23
    %v307 = vor.u32 4788187, %v306
    %v308 = vand.u32 2147483647, %v307
    %v310 = vcvt.s32.f32 %v303
    %v311 = vmul.f32 %v310, %v308
    %v312 = vxor.u32 %v311, 2147483648
    %v313 = vsel %vm230, %v312, %v311
    %v314 = vsub.s32 4, %v290
    %v315 = vsel %vm230, %v314, %v290
    %v316 = vsel %vm229, %v122, %v313
    %v317 = vsel %vm229, 0, %v315
    %v318 = vcosq.f32.pop %v316
    %v319 = vsinq.f32.pop %v316
    %vm320 = vweird.f32 %v122
    %v321 = vand.u32 %v317, 3
    %vm322 = vcmp.lt.s32.totalorder %v321, 2
    %vm323 = vcmp.eq.s32.totalorder %v321, 0
    %v324 = vxor.u32 %v319, 2147483648
    %v325 = vsel %vm323, %v318, %v324
    %vm326 = vcmp.eq.s32.totalorder %v321, 2
    %v327 = vxor.u32 %v318, 2147483648
    %v328 = vsel %vm326, %v327, %v319
    %v329 = vsel %vm322, %v325, %v328
    %v330 = vsel %vm320, nan, %v329
    %v331 = vand.u32 2147483647, %v123
    %vm332 = vcmp.le.f32.partialorder %v331, 0.7853982
    %vm333 = vcmp.lt.s32.totalorder %v123, 0
    %v334 = vand.u32 %v123, 2139095040
    %v335 = vshrl.u32 %v334, 23
    %v336 = vsub.s32 %v335, 127
    %v337 = vand.u32 2147483647, %v123
    %v338 = vand.u32 %v337, 8388607
    %v339 = vor.u32 %v338, 8388608
    %v340 = vsub.s32 0, %v339
    %v341 = vadd.s32 %v336, 1
    %vm342 = vcmp.gt.s32.totalorder %v341, 0
    %v343 = vsel %vm342, %v341, 0
    %v344 = vshrl.u32 %v343, 5
    %v345 = vand.u32 %v343, 31
    %v346 = vsub.s32 32, %v345
    %v347 = vshrl.u32 683565275, %v346
    %v348 = vshll.u32 683565275, %v345
    %v349 = vshrl.u32 2475754826, %v346
    %v350 = vor.u32 %v348, %v349
    %v351 = vshll.u32 2475754826, %v345
    %v352 = vshrl.u32 2131351028, %v346
    %v353 = vor.u32 %v351, %v352
    %v354 = vshll.u32 2131351028, %v345
    %v355 = vshrl.u32 2102212464, %v346
    %v356 = vor.u32 %v354, %v355
    %v357 = vshll.u32 2102212464, %v345
    %v358 = vshrl.u32 920167782, %v346
    %v359 = vor.u32 %v357, %v358
    %v360 = vshll.u32 920167782, %v345
    %v361 = vshrl.u32 1326507024, %v346
    %v362 = vor.u32 %v360, %v361
    %vm363 = vcmp.lt.s32.totalorder %v344, 1
    %vm364 = vcmp.lt.s32.totalorder %v344, 2
    %vm365 = vcmp.lt.s32.totalorder %v344, 3
    %vm366 = vcmp.lt.s32.totalorder %v344, 4
    %v367 = vsel %vm363, %v347, %v350
    %v368 = vsel %vm366, %v356, 2102212464
    %v369 = vsel %vm365, %v353, %v368
    %v370 = vsel %vm364, %v367, %v369
    %v371 = vsel %vm363, %v350, %v353
    %v372 = vsel %vm366, %v359, 920167782
    %v373 = vsel %vm365, %v356, %v372
    %v374 = vsel %vm364, %v371, %v373
    %v375 = vsel %vm363, %v353, %v356
    %v376 = vsel %vm366, %v362, 1326507024
    %v377 = vsel %vm365, %v359, %v376
    %v378 = vsel %vm364, %v375, %v377
    %v379 = vshll.u32 %v339, 8
    %v380 = vmul.u32.u64.compose %v379, %v378
    %v381 = vextract.low.u32 %v380
    %v382 = vextract.high.u32 %v380
    %v383 = vmul.u32.u64.compose %v379, %v374
    %v384 = vextract.low.u32 %v383
    %v385 = vextract.high.u32 %v383
    %v386 = vmul.u32 %v379, %v370
    %v387 = vadd.s32 %v382, %v384
    %vm388 = vc.u32 %v382, %v384
    %v389 = vadd.s32 %v385, 1
    %v390 = vsel %vm388, %v389, %v385
    %v391 = vadd.s32 %v386, %v390
    %v392 = vadd.s32 %v391, 536870912
    %v393 = vshrl.u32 %v392, 30
    %v394 = vshll.u32 %v393, 30
    %v395 = vsub.s32 %v391, %v394
    %vm396 = vcmp.lt.s32.totalorder %v395, 0
    %v397 = vsub.s32 0, %v395
    %v398 = vsel %vm396, %v397, %v395
    %v399 = vclz %v398
    %v400 = vsub.s32 %v399, 2
    %vm401 = vcmp.gt.s32.totalorder 0, %v400
    %v402 = vsel %vm401, 0, %v400
    %v403 = vsub.s32 32, %v402
    %v404 = vshll.u32 %v395, %v402
    %v405 = vshrl.u32 %v387, %v403
    %v406 = vor.u32 %v404, %v405
    %v407 = vsub.s32 4294967266, %v402
    %v408 = vadd.s32 %v407, 127
    %v409 = vshll.u32 %v408, 23
    %v410 = vor.u32 4788187, %v409
    %v411 = vand.u32 2147483647, %v410
    %v413 = vcvt.s32.f32 %v406
    %v414 = vmul.f32 %v413, %v411
    %v415 = vxor.u32 %v414, 2147483648
    %v416 = vsel %vm333, %v415, %v414
    %v417 = vsub.s32 4, %v393
    %v418 = vsel %vm333, %v417, %v393
    %v419 = vsel %vm332, %v123, %v416
    %v420 = vsel %vm332, 0, %v418
    %v421 = vcosq.f32.pop %v419
    %v422 = vsinq.f32.pop %v419
    %vm423 = vweird.f32 %v123
    %v424 = vand.u32 %v420, 3
    %vm425 = vcmp.lt.s32.totalorder %v424, 2
    %vm426 = vcmp.eq.s32.totalorder %v424, 0
    %v427 = vxor.u32 %v422, 2147483648
    %v428 = vsel %vm426, %v421, %v427
    %vm429 = vcmp.eq.s32.totalorder %v424, 2
    %v430 = vxor.u32 %v421, 2147483648
    %v431 = vsel %vm429, %v430, %v422
    %v432 = vsel %vm425, %v428, %v431
    %v433 = vsel %vm423, nan, %v432
    %v434 = vand.u32 2147483647, %v124
    %vm435 = vcmp.le.f32.partialorder %v434, 0.7853982
    %vm436 = vcmp.lt.s32.totalorder %v124, 0
    %v437 = vand.u32 %v124, 2139095040
    %v438 = vshrl.u32 %v437, 23
    %v439 = vsub.s32 %v438, 127
    %v440 = vand.u32 2147483647, %v124
    %v441 = vand.u32 %v440, 8388607
    %v442 = vor.u32 %v441, 8388608
    %v443 = vsub.s32 0, %v442
    %v444 = vadd.s32 %v439, 1
    %vm445 = vcmp.gt.s32.totalorder %v444, 0
    %v446 = vsel %vm445, %v444, 0
    %v447 = vshrl.u32 %v446, 5
    %v448 = vand.u32 %v446, 31
    %v449 = vsub.s32 32, %v448
    %v450 = vshrl.u32 683565275, %v449
    %v451 = vshll.u32 683565275, %v448
    %v452 = vshrl.u32 2475754826, %v449
    %v453 = vor.u32 %v451, %v452
    %v454 = vshll.u32 2475754826, %v448
    %v455 = vshrl.u32 2131351028, %v449
    %v456 = vor.u32 %v454, %v455
    %v457 = vshll.u32 2131351028, %v448
    %v458 = vshrl.u32 2102212464, %v449
    %v459 = vor.u32 %v457, %v458
    %v460 = vshll.u32 2102212464, %v448
    %v461 = vshrl.u32 920167782, %v449
    %v462 = vor.u32 %v460, %v461
    %v463 = vshll.u32 920167782, %v448
    %v464 = vshrl.u32 1326507024, %v449
    %v465 = vor.u32 %v463, %v464
    %vm466 = vcmp.lt.s32.totalorder %v447, 1
    %vm467 = vcmp.lt.s32.totalorder %v447, 2
    %vm468 = vcmp.lt.s32.totalorder %v447, 3
    %vm469 = vcmp.lt.s32.totalorder %v447, 4
    %v470 = vsel %vm466, %v450, %v453
    %v471 = vsel %vm469, %v459, 2102212464
    %v472 = vsel %vm468, %v456, %v471
    %v473 = vsel %vm467, %v470, %v472
    %v474 = vsel %vm466, %v453, %v456
    %v475 = vsel %vm469, %v462, 920167782
    %v476 = vsel %vm468, %v459, %v475
    %v477 = vsel %vm467, %v474, %v476
    %v478 = vsel %vm466, %v456, %v459
    %v479 = vsel %vm469, %v465, 1326507024
    %v480 = vsel %vm468, %v462, %v479
    %v481 = vsel %vm467, %v478, %v480
    %v482 = vshll.u32 %v442, 8
    %v483 = vmul.u32.u64.compose %v482, %v481
    %v484 = vextract.low.u32 %v483
    %v485 = vextract.high.u32 %v483
    %v486 = vmul.u32.u64.compose %v482, %v477
    %v487 = vextract.low.u32 %v486
    %v488 = vextract.high.u32 %v486
    %v489 = vmul.u32 %v482, %v473
    %v490 = vadd.s32 %v485, %v487
    %vm491 = vc.u32 %v485, %v487
    %v492 = vadd.s32 %v488, 1
    %v493 = vsel %vm491, %v492, %v488
    %v494 = vadd.s32 %v489, %v493
    %v495 = vadd.s32 %v494, 536870912
    %v496 = vshrl.u32 %v495, 30
    %v497 = vshll.u32 %v496, 30
    %v498 = vsub.s32 %v494, %v497
    %vm499 = vcmp.lt.s32.totalorder %v498, 0
    %v500 = vsub.s32 0, %v498
    %v501 = vsel %vm499, %v500, %v498
    %v502 = vclz %v501
    %v503 = vsub.s32 %v502, 2
    %vm504 = vcmp.gt.s32.totalorder 0, %v503
    %v505 = vsel %vm504, 0, %v503
    %v506 = vsub.s32 32, %v505
    %v507 = vshll.u32 %v498, %v505
    %v508 = vshrl.u32 %v490, %v506
    %v509 = vor.u32 %v507, %v508
    %v510 = vsub.s32 4294967266, %v505
    %v511 = vadd.s32 %v510, 127
    %v512 = vshll.u32 %v511, 23
    %v513 = vor.u32 4788187, %v512
    %v514 = vand.u32 2147483647, %v513
    %v516 = vcvt.s32.f32 %v509
    %v517 = vmul.f32 %v516, %v514
    %v518 = vxor.u32 %v517, 2147483648
    %v519 = vsel %vm436, %v518, %v517
    %v520 = vsub.s32 4, %v496
    %v521 = vsel %vm436, %v520, %v496
    %v522 = vsel %vm435, %v124, %v519
    %v523 = vsel %vm435, 0, %v521
    %v524 = vcosq.f32.pop %v522
    %v525 = vsinq.f32.pop %v522
    %vm526 = vweird.f32 %v124
    %v527 = vand.u32 %v523, 3
    %vm528 = vcmp.lt.s32.totalorder %v527, 2
    %vm529 = vcmp.eq.s32.totalorder %v527, 0
    %v530 = vxor.u32 %v525, 2147483648
    %v531 = vsel %vm529, %v524, %v530
    %vm532 = vcmp.eq.s32.totalorder %v527, 2
    %v533 = vxor.u32 %v524, 2147483648
    %v534 = vsel %vm532, %v533, %v525
    %v535 = vsel %vm528, %v531, %v534
    %v536 = vsel %vm526, nan, %v535
    %v537 = vmul.f32 %v112, %v227
    %v538 = vmul.f32 %v113, %v330
    %v539 = vmul.f32 %v114, %v433
    %v540 = vmul.f32 %v115, %v536
    %v541 = vand.u32 2147483647, %v121
    %vm542 = vcmp.le.f32.partialorder %v541, 0.7853982
    %vm543 = vcmp.lt.s32.totalorder %v121, 0
    %v544 = vand.u32 %v121, 2139095040
    %v545 = vshrl.u32 %v544, 23
    %v546 = vsub.s32 %v545, 127
    %v547 = vand.u32 2147483647, %v121
    %v548 = vand.u32 %v547, 8388607
    %v549 = vor.u32 %v548, 8388608
    %v550 = vsub.s32 0, %v549
    %v551 = vadd.s32 %v546, 1
    %vm552 = vcmp.gt.s32.totalorder %v551, 0
    %v553 = vsel %vm552, %v551, 0
    %v554 = vshrl.u32 %v553, 5
    %v555 = vand.u32 %v553, 31
    %v556 = vsub.s32 32, %v555
    %v557 = vshrl.u32 683565275, %v556
    %v558 = vshll.u32 683565275, %v555
    %v559 = vshrl.u32 2475754826, %v556
    %v560 = vor.u32 %v558, %v559
    %v561 = vshll.u32 2475754826, %v555
    %v562 = vshrl.u32 2131351028, %v556
    %v563 = vor.u32 %v561, %v562
    %v564 = vshll.u32 2131351028, %v555
    %v565 = vshrl.u32 2102212464, %v556
    %v566 = vor.u32 %v564, %v565
    %v567 = vshll.u32 2102212464, %v555
    %v568 = vshrl.u32 920167782, %v556
    %v569 = vor.u32 %v567, %v568
    %v570 = vshll.u32 920167782, %v555
    %v571 = vshrl.u32 1326507024, %v556
    %v572 = vor.u32 %v570, %v571
    %vm573 = vcmp.lt.s32.totalorder %v554, 1
    %vm574 = vcmp.lt.s32.totalorder %v554, 2
    %vm575 = vcmp.lt.s32.totalorder %v554, 3
    %vm576 = vcmp.lt.s32.totalorder %v554, 4
    %v577 = vsel %vm573, %v557, %v560
    %v578 = vsel %vm576, %v566, 2102212464
    %v579 = vsel %vm575, %v563, %v578
    %v580 = vsel %vm574, %v577, %v579
    %v581 = vsel %vm573, %v560, %v563
    %v582 = vsel %vm576, %v569, 920167782
    %v583 = vsel %vm575, %v566, %v582
    %v584 = vsel %vm574, %v581, %v583
    %v585 = vsel %vm573, %v563, %v566
    %v586 = vsel %vm576, %v572, 1326507024
    %v587 = vsel %vm575, %v569, %v586
    %v588 = vsel %vm574, %v585, %v587
    %v589 = vshll.u32 %v549, 8
    %v590 = vmul.u32.u64.compose %v589, %v588
    %v591 = vextract.low.u32 %v590
    %v592 = vextract.high.u32 %v590
    %v593 = vmul.u32.u64.compose %v589, %v584
    %v594 = vextract.low.u32 %v593
    %v595 = vextract.high.u32 %v593
    %v596 = vmul.u32 %v589, %v580
    %v597 = vadd.s32 %v592, %v594
    %vm598 = vc.u32 %v592, %v594
    %v599 = vadd.s32 %v595, 1
    %v600 = vsel %vm598, %v599, %v595
    %v601 = vadd.s32 %v596, %v600
    %v602 = vadd.s32 %v601, 536870912
    %v603 = vshrl.u32 %v602, 30
    %v604 = vshll.u32 %v603, 30
    %v605 = vsub.s32 %v601, %v604
    %vm606 = vcmp.lt.s32.totalorder %v605, 0
    %v607 = vsub.s32 0, %v605
    %v608 = vsel %vm606, %v607, %v605
    %v609 = vclz %v608
    %v610 = vsub.s32 %v609, 2
    %vm611 = vcmp.gt.s32.totalorder 0, %v610
    %v612 = vsel %vm611, 0, %v610
    %v613 = vsub.s32 32, %v612
    %v614 = vshll.u32 %v605, %v612
    %v615 = vshrl.u32 %v597, %v613
    %v616 = vor.u32 %v614, %v615
    %v617 = vsub.s32 4294967266, %v612
    %v618 = vadd.s32 %v617, 127
    %v619 = vshll.u32 %v618, 23
    %v620 = vor.u32 4788187, %v619
    %v621 = vand.u32 2147483647, %v620
    %v623 = vcvt.s32.f32 %v616
    %v624 = vmul.f32 %v623, %v621
    %v625 = vxor.u32 %v624, 2147483648
    %v626 = vsel %vm543, %v625, %v624
    %v627 = vsub.s32 4, %v603
    %v628 = vsel %vm543, %v627, %v603
    %v629 = vsel %vm542, %v121, %v626
    %v630 = vsel %vm542, 0, %v628
    %v631 = vcosq.f32.pop %v629
    %v632 = vsinq.f32.pop %v629
    %vm633 = vweird.f32 %v121
    %v634 = vadd.s32 %v630, 3
    %v635 = vand.u32 %v634, 3
    %vm636 = vcmp.lt.s32.totalorder %v635, 2
    %vm637 = vcmp.eq.s32.totalorder %v635, 0
    %v638 = vxor.u32 %v632, 2147483648
    %v639 = vsel %vm637, %v631, %v638
    %vm640 = vcmp.eq.s32.totalorder %v635, 2
    %v641 = vxor.u32 %v631, 2147483648
    %v642 = vsel %vm640, %v641, %v632
    %v643 = vsel %vm636, %v639, %v642
    %v644 = vsel %vm633, nan, %v643
    %v645 = vand.u32 2147483647, %v122
    %vm646 = vcmp.le.f32.partialorder %v645, 0.7853982
    %vm647 = vcmp.lt.s32.totalorder %v122, 0
    %v648 = vand.u32 %v122, 2139095040
    %v649 = vshrl.u32 %v648, 23
    %v650 = vsub.s32 %v649, 127
    %v651 = vand.u32 2147483647, %v122
    %v652 = vand.u32 %v651, 8388607
    %v653 = vor.u32 %v652, 8388608
    %v654 = vsub.s32 0, %v653
    %v655 = vadd.s32 %v650, 1
    %vm656 = vcmp.gt.s32.totalorder %v655, 0
    %v657 = vsel %vm656, %v655, 0
    %v658 = vshrl.u32 %v657, 5
    %v659 = vand.u32 %v657, 31
    %v660 = vsub.s32 32, %v659
    %v661 = vshrl.u32 683565275, %v660
    %v662 = vshll.u32 683565275, %v659
    %v663 = vshrl.u32 2475754826, %v660
    %v664 = vor.u32 %v662, %v663
    %v665 = vshll.u32 2475754826, %v659
    %v666 = vshrl.u32 2131351028, %v660
    %v667 = vor.u32 %v665, %v666
    %v668 = vshll.u32 2131351028, %v659
    %v669 = vshrl.u32 2102212464, %v660
    %v670 = vor.u32 %v668, %v669
    %v671 = vshll.u32 2102212464, %v659
    %v672 = vshrl.u32 920167782, %v660
    %v673 = vor.u32 %v671, %v672
    %v674 = vshll.u32 920167782, %v659
    %v675 = vshrl.u32 1326507024, %v660
    %v676 = vor.u32 %v674, %v675
    %vm677 = vcmp.lt.s32.totalorder %v658, 1
    %vm678 = vcmp.lt.s32.totalorder %v658, 2
    %vm679 = vcmp.lt.s32.totalorder %v658, 3
    %vm680 = vcmp.lt.s32.totalorder %v658, 4
    %v681 = vsel %vm677, %v661, %v664
    %v682 = vsel %vm680, %v670, 2102212464
    %v683 = vsel %vm679, %v667, %v682
    %v684 = vsel %vm678, %v681, %v683
    %v685 = vsel %vm677, %v664, %v667
    %v686 = vsel %vm680, %v673, 920167782
    %v687 = vsel %vm679, %v670, %v686
    %v688 = vsel %vm678, %v685, %v687
    %v689 = vsel %vm677, %v667, %v670
    %v690 = vsel %vm680, %v676, 1326507024
    %v691 = vsel %vm679, %v673, %v690
    %v692 = vsel %vm678, %v689, %v691
    %v693 = vshll.u32 %v653, 8
    %v694 = vmul.u32.u64.compose %v693, %v692
    %v695 = vextract.low.u32 %v694
    %v696 = vextract.high.u32 %v694
    %v697 = vmul.u32.u64.compose %v693, %v688
    %v698 = vextract.low.u32 %v697
    %v699 = vextract.high.u32 %v697
    %v700 = vmul.u32 %v693, %v684
    %v701 = vadd.s32 %v696, %v698
    %vm702 = vc.u32 %v696, %v698
    %v703 = vadd.s32 %v699, 1
    %v704 = vsel %vm702, %v703, %v699
    %v705 = vadd.s32 %v700, %v704
    %v706 = vadd.s32 %v705, 536870912
    %v707 = vshrl.u32 %v706, 30
    %v708 = vshll.u32 %v707, 30
    %v709 = vsub.s32 %v705, %v708
    %vm710 = vcmp.lt.s32.totalorder %v709, 0
    %v711 = vsub.s32 0, %v709
    %v712 = vsel %vm710, %v711, %v709
    %v713 = vclz %v712
    %v714 = vsub.s32 %v713, 2
    %vm715 = vcmp.gt.s32.totalorder 0, %v714
    %v716 = vsel %vm715, 0, %v714
    %v717 = vsub.s32 32, %v716
    %v718 = vshll.u32 %v709, %v716
    %v719 = vshrl.u32 %v701, %v717
    %v720 = vor.u32 %v718, %v719
    %v721 = vsub.s32 4294967266, %v716
    %v722 = vadd.s32 %v721, 127
    %v723 = vshll.u32 %v722, 23
    %v724 = vor.u32 4788187, %v723
    %v725 = vand.u32 2147483647, %v724
    %v727 = vcvt.s32.f32 %v720
    %v728 = vmul.f32 %v727, %v725
    %v729 = vxor.u32 %v728, 2147483648
    %v730 = vsel %vm647, %v729, %v728
    %v731 = vsub.s32 4, %v707
    %v732 = vsel %vm647, %v731, %v707
    %v733 = vsel %vm646, %v122, %v730
    %v734 = vsel %vm646, 0, %v732
    %v735 = vcosq.f32.pop %v733
    %v736 = vsinq.f32.pop %v733
    %vm737 = vweird.f32 %v122
    %v738 = vadd.s32 %v734, 3
    %v739 = vand.u32 %v738, 3
    %vm740 = vcmp.lt.s32.totalorder %v739, 2
    %vm741 = vcmp.eq.s32.totalorder %v739, 0
    %v742 = vxor.u32 %v736, 2147483648
    %v743 = vsel %vm741, %v735, %v742
    %vm744 = vcmp.eq.s32.totalorder %v739, 2
    %v745 = vxor.u32 %v735, 2147483648
    %v746 = vsel %vm744, %v745, %v736
    %v747 = vsel %vm740, %v743, %v746
    %v748 = vsel %vm737, nan, %v747
    %v749 = vand.u32 2147483647, %v123
    %vm750 = vcmp.le.f32.partialorder %v749, 0.7853982
    %vm751 = vcmp.lt.s32.totalorder %v123, 0
    %v752 = vand.u32 %v123, 2139095040
    %v753 = vshrl.u32 %v752, 23
    %v754 = vsub.s32 %v753, 127
    %v755 = vand.u32 2147483647, %v123
    %v756 = vand.u32 %v755, 8388607
    %v757 = vor.u32 %v756, 8388608
    %v758 = vsub.s32 0, %v757
    %v759 = vadd.s32 %v754, 1
    %vm760 = vcmp.gt.s32.totalorder %v759, 0
    %v761 = vsel %vm760, %v759, 0
    %v762 = vshrl.u32 %v761, 5
    %v763 = vand.u32 %v761, 31
    %v764 = vsub.s32 32, %v763
    %v765 = vshrl.u32 683565275, %v764
    %v766 = vshll.u32 683565275, %v763
    %v767 = vshrl.u32 2475754826, %v764
    %v768 = vor.u32 %v766, %v767
    %v769 = vshll.u32 2475754826, %v763
    %v770 = vshrl.u32 2131351028, %v764
    %v771 = vor.u32 %v769, %v770
    %v772 = vshll.u32 2131351028, %v763
    %v773 = vshrl.u32 2102212464, %v764
    %v774 = vor.u32 %v772, %v773
    %v775 = vshll.u32 2102212464, %v763
    %v776 = vshrl.u32 920167782, %v764
    %v777 = vor.u32 %v775, %v776
    %v778 = vshll.u32 920167782, %v763
    %v779 = vshrl.u32 1326507024, %v764
    %v780 = vor.u32 %v778, %v779
    %vm781 = vcmp.lt.s32.totalorder %v762, 1
    %vm782 = vcmp.lt.s32.totalorder %v762, 2
    %vm783 = vcmp.lt.s32.totalorder %v762, 3
    %vm784 = vcmp.lt.s32.totalorder %v762, 4
    %v785 = vsel %vm781, %v765, %v768
    %v786 = vsel %vm784, %v774, 2102212464
    %v787 = vsel %vm783, %v771, %v786
    %v788 = vsel %vm782, %v785, %v787
    %v789 = vsel %vm781, %v768, %v771
    %v790 = vsel %vm784, %v777, 920167782
    %v791 = vsel %vm783, %v774, %v790
    %v792 = vsel %vm782, %v789, %v791
    %v793 = vsel %vm781, %v771, %v774
    %v794 = vsel %vm784, %v780, 1326507024
    %v795 = vsel %vm783, %v777, %v794
    %v796 = vsel %vm782, %v793, %v795
    %v797 = vshll.u32 %v757, 8
    %v798 = vmul.u32.u64.compose %v797, %v796
    %v799 = vextract.low.u32 %v798
    %v800 = vextract.high.u32 %v798
    %v801 = vmul.u32.u64.compose %v797, %v792
    %v802 = vextract.low.u32 %v801
    %v803 = vextract.high.u32 %v801
    %v804 = vmul.u32 %v797, %v788
    %v805 = vadd.s32 %v800, %v802
    %vm806 = vc.u32 %v800, %v802
    %v807 = vadd.s32 %v803, 1
    %v808 = vsel %vm806, %v807, %v803
    %v809 = vadd.s32 %v804, %v808
    %v810 = vadd.s32 %v809, 536870912
    %v811 = vshrl.u32 %v810, 30
    %v812 = vshll.u32 %v811, 30
    %v813 = vsub.s32 %v809, %v812
    %vm814 = vcmp.lt.s32.totalorder %v813, 0
    %v815 = vsub.s32 0, %v813
    %v816 = vsel %vm814, %v815, %v813
    %v817 = vclz %v816
    %v818 = vsub.s32 %v817, 2
    %vm819 = vcmp.gt.s32.totalorder 0, %v818
    %v820 = vsel %vm819, 0, %v818
    %v821 = vsub.s32 32, %v820
    %v822 = vshll.u32 %v813, %v820
    %v823 = vshrl.u32 %v805, %v821
    %v824 = vor.u32 %v822, %v823
    %v825 = vsub.s32 4294967266, %v820
    %v826 = vadd.s32 %v825, 127
    %v827 = vshll.u32 %v826, 23
    %v828 = vor.u32 4788187, %v827
    %v829 = vand.u32 2147483647, %v828
    %v831 = vcvt.s32.f32 %v824
    %v832 = vmul.f32 %v831, %v829
    %v833 = vxor.u32 %v832, 2147483648
    %v834 = vsel %vm751, %v833, %v832
    %v835 = vsub.s32 4, %v811
    %v836 = vsel %vm751, %v835, %v811
    %v837 = vsel %vm750, %v123, %v834
    %v838 = vsel %vm750, 0, %v836
    %v839 = vcosq.f32.pop %v837
    %v840 = vsinq.f32.pop %v837
    %vm841 = vweird.f32 %v123
    %v842 = vadd.s32 %v838, 3
    %v843 = vand.u32 %v842, 3
    %vm844 = vcmp.lt.s32.totalorder %v843, 2
    %vm845 = vcmp.eq.s32.totalorder %v843, 0
    %v846 = vxor.u32 %v840, 2147483648
    %v847 = vsel %vm845, %v839, %v846
    %vm848 = vcmp.eq.s32.totalorder %v843, 2
    %v849 = vxor.u32 %v839, 2147483648
    %v850 = vsel %vm848, %v849, %v840
    %v851 = vsel %vm844, %v847, %v850
    %v852 = vsel %vm841, nan, %v851
    %v853 = vand.u32 2147483647, %v124
    %vm854 = vcmp.le.f32.partialorder %v853, 0.7853982
    %vm855 = vcmp.lt.s32.totalorder %v124, 0
    %v856 = vand.u32 %v124, 2139095040
    %v857 = vshrl.u32 %v856, 23
    %v858 = vsub.s32 %v857, 127
    %v859 = vand.u32 2147483647, %v124
    %v860 = vand.u32 %v859, 8388607
    %v861 = vor.u32 %v860, 8388608
    %v862 = vsub.s32 0, %v861
    %v863 = vadd.s32 %v858, 1
    %vm864 = vcmp.gt.s32.totalorder %v863, 0
    %v865 = vsel %vm864, %v863, 0
    %v866 = vshrl.u32 %v865, 5
    %v867 = vand.u32 %v865, 31
    %v868 = vsub.s32 32, %v867
    %v869 = vshrl.u32 683565275, %v868
    %v870 = vshll.u32 683565275, %v867
    %v871 = vshrl.u32 2475754826, %v868
    %v872 = vor.u32 %v870, %v871
    %v873 = vshll.u32 2475754826, %v867
    %v874 = vshrl.u32 2131351028, %v868
    %v875 = vor.u32 %v873, %v874
    %v876 = vshll.u32 2131351028, %v867
    %v877 = vshrl.u32 2102212464, %v868
    %v878 = vor.u32 %v876, %v877
    %v879 = vshll.u32 2102212464, %v867
    %v880 = vshrl.u32 920167782, %v868
    %v881 = vor.u32 %v879, %v880
    %v882 = vshll.u32 920167782, %v867
    %v883 = vshrl.u32 1326507024, %v868
    %v884 = vor.u32 %v882, %v883
    %vm885 = vcmp.lt.s32.totalorder %v866, 1
    %vm886 = vcmp.lt.s32.totalorder %v866, 2
    %vm887 = vcmp.lt.s32.totalorder %v866, 3
    %vm888 = vcmp.lt.s32.totalorder %v866, 4
    %v889 = vsel %vm885, %v869, %v872
    %v890 = vsel %vm888, %v878, 2102212464
    %v891 = vsel %vm887, %v875, %v890
    %v892 = vsel %vm886, %v889, %v891
    %v893 = vsel %vm885, %v872, %v875
    %v894 = vsel %vm888, %v881, 920167782
    %v895 = vsel %vm887, %v878, %v894
    %v896 = vsel %vm886, %v893, %v895
    %v897 = vsel %vm885, %v875, %v878
    %v898 = vsel %vm888, %v884, 1326507024
    %v899 = vsel %vm887, %v881, %v898
    %v900 = vsel %vm886, %v897, %v899
    %v901 = vshll.u32 %v861, 8
    %v902 = vmul.u32.u64.compose %v901, %v900
    %v903 = vextract.low.u32 %v902
    %v904 = vextract.high.u32 %v902
    %v905 = vmul.u32.u64.compose %v901, %v896
    %v906 = vextract.low.u32 %v905
    %v907 = vextract.high.u32 %v905
    %v908 = vmul.u32 %v901, %v892
    %v909 = vadd.s32 %v904, %v906
    %vm910 = vc.u32 %v904, %v906
    %v911 = vadd.s32 %v907, 1
    %v912 = vsel %vm910, %v911, %v907
    %v913 = vadd.s32 %v908, %v912
    %v914 = vadd.s32 %v913, 536870912
    %v915 = vshrl.u32 %v914, 30
    %v916 = vshll.u32 %v915, 30
    %v917 = vsub.s32 %v913, %v916
    %vm918 = vcmp.lt.s32.totalorder %v917, 0
    %v919 = vsub.s32 0, %v917
    %v920 = vsel %vm918, %v919, %v917
    %v921 = vclz %v920
    %v922 = vsub.s32 %v921, 2
    %vm923 = vcmp.gt.s32.totalorder 0, %v922
    %v924 = vsel %vm923, 0, %v922
    %v925 = vsub.s32 32, %v924
    %v926 = vshll.u32 %v917, %v924
    %v927 = vshrl.u32 %v909, %v925
    %v928 = vor.u32 %v926, %v927
    %v929 = vsub.s32 4294967266, %v924
    %v930 = vadd.s32 %v929, 127
    %v931 = vshll.u32 %v930, 23
    %v932 = vor.u32 4788187, %v931
    %v933 = vand.u32 2147483647, %v932
    %v935 = vcvt.s32.f32 %v928
    %v936 = vmul.f32 %v935, %v933
    %v937 = vxor.u32 %v936, 2147483648
    %v938 = vsel %vm855, %v937, %v936
    %v939 = vsub.s32 4, %v915
    %v940 = vsel %vm855, %v939, %v915
    %v941 = vsel %vm854, %v124, %v938
    %v942 = vsel %vm854, 0, %v940
    %v943 = vcosq.f32.pop %v941
    %v944 = vsinq.f32.pop %v941
    %vm945 = vweird.f32 %v124
    %v946 = vadd.s32 %v942, 3
    %v947 = vand.u32 %v946, 3
    %vm948 = vcmp.lt.s32.totalorder %v947, 2
    %vm949 = vcmp.eq.s32.totalorder %v947, 0
    %v950 = vxor.u32 %v944, 2147483648
    %v951 = vsel %vm949, %v943, %v950
    %vm952 = vcmp.eq.s32.totalorder %v947, 2
    %v953 = vxor.u32 %v943, 2147483648
    %v954 = vsel %vm952, %v953, %v944
    %v955 = vsel %vm948, %v951, %v954
    %v956 = vsel %vm945, nan, %v955
    %v957 = vmul.f32 %v116, %v644
    %v958 = vmul.f32 %v117, %v748
    %v959 = vmul.f32 %v118, %v852
    %v960 = vmul.f32 %v119, %v956
    %v961 = vadd.f32 %v537, %v957
    %v962 = vadd.f32 %v538, %v958
    %v963 = vadd.f32 %v539, %v959
    %v964 = vadd.f32 %v540, %v960
    %v965 = vmul.f32 %v112, %v112
    %v966 = vmul.f32 %v113, %v113
    %v967 = vmul.f32 %v114, %v114
    %v968 = vmul.f32 %v115, %v115
    %v969 = vmul.f32 %v116, %v116
    %v970 = vmul.f32 %v117, %v117
    %v971 = vmul.f32 %v118, %v118
    %v972 = vmul.f32 %v119, %v119
    %v973 = vadd.f32 %v965, %v969
    %v974 = vadd.f32 %v966, %v970
    %v975 = vadd.f32 %v967, %v971
    %v976 = vadd.f32 %v968, %v972
    %v977 = vadd.f32 %v973, 1e-30
    %v978 = vadd.f32 %v974, 1e-30
    %v979 = vadd.f32 %v975, 1e-30
    %v980 = vadd.f32 %v976, 1e-30
    %v981 = vrsqrt.pop %v977
    %v982 = vrsqrt.pop %v978
    %v983 = vrsqrt.pop %v979
    %v984 = vrsqrt.pop %v980
    %v985 = vmul.f32 %v961, %v981
    %v986 = vmul.f32 %v962, %v982
    %v987 = vmul.f32 %v963, %v983
    %v988 = vmul.f32 %v964, %v984
    %v989 = vsub.f32 1.0, %v985
    %v990 = vsub.f32 1.0, %v986
    %v991 = vsub.f32 1.0, %v987
    %v992 = vsub.f32 1.0, %v988
    %v993 = vadd.f32 %v989, 0.0
    %v994 = vadd.f32 %v990, 0.0
    %v995 = vadd.f32 %v991, 0.0
    %v996 = vadd.f32 %v992, 0.0
    %s997 = sadd.s32 0, 128
    %s998 = scalar_lea.vmem [#allocation6], %s997
    %v999 = vld [vmem:[%s998] sm:$0xff]
    %v1000 = vld [vmem:[%s998 + $0x8] sm:$0xff]
    %v1001 = vld [vmem:[%s998 + $0x10] sm:$0xff]
    %v1002 = vld [vmem:[%s998 + $0x18] sm:$0xff]
    %s1003 = sadd.s32 0, 160
    %s1004 = scalar_lea.vmem [#allocation6], %s1003
    %v1005 = vld [vmem:[%s1004] sm:$0xff]
    %v1006 = vld [vmem:[%s1004 + $0x8] sm:$0xff]
    %v1007 = vld [vmem:[%s1004 + $0x10] sm:$0xff]
    %v1008 = vld [vmem:[%s1004 + $0x18] sm:$0xff]
    %s1009 = sadd.s32 0, 192
    %s1010 = scalar_lea.vmem [#allocation6], %s1009
    %v1011 = vld [vmem:[%s1010] sm:$0xff]
    %v1012 = vld [vmem:[%s1010 + $0x8] sm:$0xff]
    %v1013 = vld [vmem:[%s1010 + $0x10] sm:$0xff]
    %v1014 = vld [vmem:[%s1010 + $0x18] sm:$0xff]
    %s1015 = sadd.s32 0, 224
    %s1016 = scalar_lea.vmem [#allocation6], %s1015
    %v1017 = vld [vmem:[%s1016] sm:$0xff]
    %v1018 = vld [vmem:[%s1016 + $0x8] sm:$0xff]
    %v1019 = vld [vmem:[%s1016 + $0x10] sm:$0xff]
    %v1020 = vld [vmem:[%s1016 + $0x18] sm:$0xff]
    %v1021 = vsub.f32 %v999, %v1011
    %v1022 = vsub.f32 %v1000, %v1012
    %v1023 = vsub.f32 %v1001, %v1013
    %v1024 = vsub.f32 %v1002, %v1014
    %v1025 = vadd.f32 %v1021, 1e-08
    %v1026 = vadd.f32 %v1022, 1e-08
    %v1027 = vadd.f32 %v1023, 1e-08
    %v1028 = vadd.f32 %v1024, 1e-08
    %v1029 = vsub.f32 %v1017, %v1005
    %v1030 = vsub.f32 %v1018, %v1006
    %v1031 = vsub.f32 %v1019, %v1007
    %v1032 = vsub.f32 %v1020, %v1008
    %v1033 = vstv %s70
    %v1034 = vmul.f32 %v1033, %v82
    %v1035 = vmul.f32 %v1033, %v83
    %v1036 = vmul.f32 %v1033, %v84
    %v1037 = vmul.f32 %v1033, %v85
    %v1038 = vand.u32 2147483647, %v1034
    %vm1039 = vcmp.le.f32.partialorder %v1038, 0.7853982
    %vm1040 = vcmp.lt.s32.totalorder %v1034, 0
    %v1041 = vand.u32 %v1034, 2139095040
    %v1042 = vshrl.u32 %v1041, 23
    %v1043 = vsub.s32 %v1042, 127
    %v1044 = vand.u32 2147483647, %v1034
    %v1045 = vand.u32 %v1044, 8388607
    %v1046 = vor.u32 %v1045, 8388608
    %v1047 = vsub.s32 0, %v1046
    %v1048 = vadd.s32 %v1043, 1
    %vm1049 = vcmp.gt.s32.totalorder %v1048, 0
    %v1050 = vsel %vm1049, %v1048, 0
    %v1051 = vshrl.u32 %v1050, 5
    %v1052 = vand.u32 %v1050, 31
    %v1053 = vsub.s32 32, %v1052
    %v1054 = vshrl.u32 683565275, %v1053
    %v1055 = vshll.u32 683565275, %v1052
    %v1056 = vshrl.u32 2475754826, %v1053
    %v1057 = vor.u32 %v1055, %v1056
    %v1058 = vshll.u32 2475754826, %v1052
    %v1059 = vshrl.u32 2131351028, %v1053
    %v1060 = vor.u32 %v1058, %v1059
    %v1061 = vshll.u32 2131351028, %v1052
    %v1062 = vshrl.u32 2102212464, %v1053
    %v1063 = vor.u32 %v1061, %v1062
    %v1064 = vshll.u32 2102212464, %v1052
    %v1065 = vshrl.u32 920167782, %v1053
    %v1066 = vor.u32 %v1064, %v1065
    %v1067 = vshll.u32 920167782, %v1052
    %v1068 = vshrl.u32 1326507024, %v1053
    %v1069 = vor.u32 %v1067, %v1068
    %vm1070 = vcmp.lt.s32.totalorder %v1051, 1
    %vm1071 = vcmp.lt.s32.totalorder %v1051, 2
    %vm1072 = vcmp.lt.s32.totalorder %v1051, 3
    %vm1073 = vcmp.lt.s32.totalorder %v1051, 4
    %v1074 = vsel %vm1070, %v1054, %v1057
    %v1075 = vsel %vm1073, %v1063, 2102212464
    %v1076 = vsel %vm1072, %v1060, %v1075
    %v1077 = vsel %vm1071, %v1074, %v1076
    %v1078 = vsel %vm1070, %v1057, %v1060
    %v1079 = vsel %vm1073, %v1066, 920167782
    %v1080 = vsel %vm1072, %v1063, %v1079
    %v1081 = vsel %vm1071, %v1078, %v1080
    %v1082 = vsel %vm1070, %v1060, %v1063
    %v1083 = vsel %vm1073, %v1069, 1326507024
    %v1084 = vsel %vm1072, %v1066, %v1083
    %v1085 = vsel %vm1071, %v1082, %v1084
    %v1086 = vshll.u32 %v1046, 8
    %v1087 = vmul.u32.u64.compose %v1086, %v1085
    %v1088 = vextract.low.u32 %v1087
    %v1089 = vextract.high.u32 %v1087
    %v1090 = vmul.u32.u64.compose %v1086, %v1081
    %v1091 = vextract.low.u32 %v1090
    %v1092 = vextract.high.u32 %v1090
    %v1093 = vmul.u32 %v1086, %v1077
    %v1094 = vadd.s32 %v1089, %v1091
    %vm1095 = vc.u32 %v1089, %v1091
    %v1096 = vadd.s32 %v1092, 1
    %v1097 = vsel %vm1095, %v1096, %v1092
    %v1098 = vadd.s32 %v1093, %v1097
    %v1099 = vadd.s32 %v1098, 536870912
    %v1100 = vshrl.u32 %v1099, 30
    %v1101 = vshll.u32 %v1100, 30
    %v1102 = vsub.s32 %v1098, %v1101
    %vm1103 = vcmp.lt.s32.totalorder %v1102, 0
    %v1104 = vsub.s32 0, %v1102
    %v1105 = vsel %vm1103, %v1104, %v1102
    %v1106 = vclz %v1105
    %v1107 = vsub.s32 %v1106, 2
    %vm1108 = vcmp.gt.s32.totalorder 0, %v1107
    %v1109 = vsel %vm1108, 0, %v1107
    %v1110 = vsub.s32 32, %v1109
    %v1111 = vshll.u32 %v1102, %v1109
    %v1112 = vshrl.u32 %v1094, %v1110
    %v1113 = vor.u32 %v1111, %v1112
    %v1114 = vsub.s32 4294967266, %v1109
    %v1115 = vadd.s32 %v1114, 127
    %v1116 = vshll.u32 %v1115, 23
    %v1117 = vor.u32 4788187, %v1116
    %v1118 = vand.u32 2147483647, %v1117
    %v1120 = vcvt.s32.f32 %v1113
    %v1121 = vmul.f32 %v1120, %v1118
    %v1122 = vxor.u32 %v1121, 2147483648
    %v1123 = vsel %vm1040, %v1122, %v1121
    %v1124 = vsub.s32 4, %v1100
    %v1125 = vsel %vm1040, %v1124, %v1100
    %v1126 = vsel %vm1039, %v1034, %v1123
    %v1127 = vsel %vm1039, 0, %v1125
    %v1128 = vcosq.f32.pop %v1126
    %v1129 = vsinq.f32.pop %v1126
    %vm1130 = vweird.f32 %v1034
    %v1131 = vand.u32 %v1127, 3
    %vm1132 = vcmp.lt.s32.totalorder %v1131, 2
    %vm1133 = vcmp.eq.s32.totalorder %v1131, 0
    %v1134 = vxor.u32 %v1129, 2147483648
    %v1135 = vsel %vm1133, %v1128, %v1134
    %vm1136 = vcmp.eq.s32.totalorder %v1131, 2
    %v1137 = vxor.u32 %v1128, 2147483648
    %v1138 = vsel %vm1136, %v1137, %v1129
    %v1139 = vsel %vm1132, %v1135, %v1138
    %v1140 = vsel %vm1130, nan, %v1139
    %v1141 = vand.u32 2147483647, %v1035
    %vm1142 = vcmp.le.f32.partialorder %v1141, 0.7853982
    %vm1143 = vcmp.lt.s32.totalorder %v1035, 0
    %v1144 = vand.u32 %v1035, 2139095040
    %v1145 = vshrl.u32 %v1144, 23
    %v1146 = vsub.s32 %v1145, 127
    %v1147 = vand.u32 2147483647, %v1035
    %v1148 = vand.u32 %v1147, 8388607
    %v1149 = vor.u32 %v1148, 8388608
    %v1150 = vsub.s32 0, %v1149
    %v1151 = vadd.s32 %v1146, 1
    %vm1152 = vcmp.gt.s32.totalorder %v1151, 0
    %v1153 = vsel %vm1152, %v1151, 0
    %v1154 = vshrl.u32 %v1153, 5
    %v1155 = vand.u32 %v1153, 31
    %v1156 = vsub.s32 32, %v1155
    %v1157 = vshrl.u32 683565275, %v1156
    %v1158 = vshll.u32 683565275, %v1155
    %v1159 = vshrl.u32 2475754826, %v1156
    %v1160 = vor.u32 %v1158, %v1159
    %v1161 = vshll.u32 2475754826, %v1155
    %v1162 = vshrl.u32 2131351028, %v1156
    %v1163 = vor.u32 %v1161, %v1162
    %v1164 = vshll.u32 2131351028, %v1155
    %v1165 = vshrl.u32 2102212464, %v1156
    %v1166 = vor.u32 %v1164, %v1165
    %v1167 = vshll.u32 2102212464, %v1155
    %v1168 = vshrl.u32 920167782, %v1156
    %v1169 = vor.u32 %v1167, %v1168
    %v1170 = vshll.u32 920167782, %v1155
    %v1171 = vshrl.u32 1326507024, %v1156
    %v1172 = vor.u32 %v1170, %v1171
    %vm1173 = vcmp.lt.s32.totalorder %v1154, 1
    %vm1174 = vcmp.lt.s32.totalorder %v1154, 2
    %vm1175 = vcmp.lt.s32.totalorder %v1154, 3
    %vm1176 = vcmp.lt.s32.totalorder %v1154, 4
    %v1177 = vsel %vm1173, %v1157, %v1160
    %v1178 = vsel %vm1176, %v1166, 2102212464
    %v1179 = vsel %vm1175, %v1163, %v1178
    %v1180 = vsel %vm1174, %v1177, %v1179
    %v1181 = vsel %vm1173, %v1160, %v1163
    %v1182 = vsel %vm1176, %v1169, 920167782
    %v1183 = vsel %vm1175, %v1166, %v1182
    %v1184 = vsel %vm1174, %v1181, %v1183
    %v1185 = vsel %vm1173, %v1163, %v1166
    %v1186 = vsel %vm1176, %v1172, 1326507024
    %v1187 = vsel %vm1175, %v1169, %v1186
    %v1188 = vsel %vm1174, %v1185, %v1187
    %v1189 = vshll.u32 %v1149, 8
    %v1190 = vmul.u32.u64.compose %v1189, %v1188
    %v1191 = vextract.low.u32 %v1190
    %v1192 = vextract.high.u32 %v1190
    %v1193 = vmul.u32.u64.compose %v1189, %v1184
    %v1194 = vextract.low.u32 %v1193
    %v1195 = vextract.high.u32 %v1193
    %v1196 = vmul.u32 %v1189, %v1180
    %v1197 = vadd.s32 %v1192, %v1194
    %vm1198 = vc.u32 %v1192, %v1194
    %v1199 = vadd.s32 %v1195, 1
    %v1200 = vsel %vm1198, %v1199, %v1195
    %v1201 = vadd.s32 %v1196, %v1200
    %v1202 = vadd.s32 %v1201, 536870912
    %v1203 = vshrl.u32 %v1202, 30
    %v1204 = vshll.u32 %v1203, 30
    %v1205 = vsub.s32 %v1201, %v1204
    %vm1206 = vcmp.lt.s32.totalorder %v1205, 0
    %v1207 = vsub.s32 0, %v1205
    %v1208 = vsel %vm1206, %v1207, %v1205
    %v1209 = vclz %v1208
    %v1210 = vsub.s32 %v1209, 2
    %vm1211 = vcmp.gt.s32.totalorder 0, %v1210
    %v1212 = vsel %vm1211, 0, %v1210
    %v1213 = vsub.s32 32, %v1212
    %v1214 = vshll.u32 %v1205, %v1212
    %v1215 = vshrl.u32 %v1197, %v1213
    %v1216 = vor.u32 %v1214, %v1215
    %v1217 = vsub.s32 4294967266, %v1212
    %v1218 = vadd.s32 %v1217, 127
    %v1219 = vshll.u32 %v1218, 23
    %v1220 = vor.u32 4788187, %v1219
    %v1221 = vand.u32 2147483647, %v1220
    %v1223 = vcvt.s32.f32 %v1216
    %v1224 = vmul.f32 %v1223, %v1221
    %v1225 = vxor.u32 %v1224, 2147483648
    %v1226 = vsel %vm1143, %v1225, %v1224
    %v1227 = vsub.s32 4, %v1203
    %v1228 = vsel %vm1143, %v1227, %v1203
    %v1229 = vsel %vm1142, %v1035, %v1226
    %v1230 = vsel %vm1142, 0, %v1228
    %v1231 = vcosq.f32.pop %v1229
    %v1232 = vsinq.f32.pop %v1229
    %vm1233 = vweird.f32 %v1035
    %v1234 = vand.u32 %v1230, 3
    %vm1235 = vcmp.lt.s32.totalorder %v1234, 2
    %vm1236 = vcmp.eq.s32.totalorder %v1234, 0
    %v1237 = vxor.u32 %v1232, 2147483648
    %v1238 = vsel %vm1236, %v1231, %v1237
    %vm1239 = vcmp.eq.s32.totalorder %v1234, 2
    %v1240 = vxor.u32 %v1231, 2147483648
    %v1241 = vsel %vm1239, %v1240, %v1232
    %v1242 = vsel %vm1235, %v1238, %v1241
    %v1243 = vsel %vm1233, nan, %v1242
    %v1244 = vand.u32 2147483647, %v1036
    %vm1245 = vcmp.le.f32.partialorder %v1244, 0.7853982
    %vm1246 = vcmp.lt.s32.totalorder %v1036, 0
    %v1247 = vand.u32 %v1036, 2139095040
    %v1248 = vshrl.u32 %v1247, 23
    %v1249 = vsub.s32 %v1248, 127
    %v1250 = vand.u32 2147483647, %v1036
    %v1251 = vand.u32 %v1250, 8388607
    %v1252 = vor.u32 %v1251, 8388608
    %v1253 = vsub.s32 0, %v1252
    %v1254 = vadd.s32 %v1249, 1
    %vm1255 = vcmp.gt.s32.totalorder %v1254, 0
    %v1256 = vsel %vm1255, %v1254, 0
    %v1257 = vshrl.u32 %v1256, 5
    %v1258 = vand.u32 %v1256, 31
    %v1259 = vsub.s32 32, %v1258
    %v1260 = vshrl.u32 683565275, %v1259
    %v1261 = vshll.u32 683565275, %v1258
    %v1262 = vshrl.u32 2475754826, %v1259
    %v1263 = vor.u32 %v1261, %v1262
    %v1264 = vshll.u32 2475754826, %v1258
    %v1265 = vshrl.u32 2131351028, %v1259
    %v1266 = vor.u32 %v1264, %v1265
    %v1267 = vshll.u32 2131351028, %v1258
    %v1268 = vshrl.u32 2102212464, %v1259
    %v1269 = vor.u32 %v1267, %v1268
    %v1270 = vshll.u32 2102212464, %v1258
    %v1271 = vshrl.u32 920167782, %v1259
    %v1272 = vor.u32 %v1270, %v1271
    %v1273 = vshll.u32 920167782, %v1258
    %v1274 = vshrl.u32 1326507024, %v1259
    %v1275 = vor.u32 %v1273, %v1274
    %vm1276 = vcmp.lt.s32.totalorder %v1257, 1
    %vm1277 = vcmp.lt.s32.totalorder %v1257, 2
    %vm1278 = vcmp.lt.s32.totalorder %v1257, 3
    %vm1279 = vcmp.lt.s32.totalorder %v1257, 4
    %v1280 = vsel %vm1276, %v1260, %v1263
    %v1281 = vsel %vm1279, %v1269, 2102212464
    %v1282 = vsel %vm1278, %v1266, %v1281
    %v1283 = vsel %vm1277, %v1280, %v1282
    %v1284 = vsel %vm1276, %v1263, %v1266
    %v1285 = vsel %vm1279, %v1272, 920167782
    %v1286 = vsel %vm1278, %v1269, %v1285
    %v1287 = vsel %vm1277, %v1284, %v1286
    %v1288 = vsel %vm1276, %v1266, %v1269
    %v1289 = vsel %vm1279, %v1275, 1326507024
    %v1290 = vsel %vm1278, %v1272, %v1289
    %v1291 = vsel %vm1277, %v1288, %v1290
    %v1292 = vshll.u32 %v1252, 8
    %v1293 = vmul.u32.u64.compose %v1292, %v1291
    %v1294 = vextract.low.u32 %v1293
    %v1295 = vextract.high.u32 %v1293
    %v1296 = vmul.u32.u64.compose %v1292, %v1287
    %v1297 = vextract.low.u32 %v1296
    %v1298 = vextract.high.u32 %v1296
    %v1299 = vmul.u32 %v1292, %v1283
    %v1300 = vadd.s32 %v1295, %v1297
    %vm1301 = vc.u32 %v1295, %v1297
    %v1302 = vadd.s32 %v1298, 1
    %v1303 = vsel %vm1301, %v1302, %v1298
    %v1304 = vadd.s32 %v1299, %v1303
    %v1305 = vadd.s32 %v1304, 536870912
    %v1306 = vshrl.u32 %v1305, 30
    %v1307 = vshll.u32 %v1306, 30
    %v1308 = vsub.s32 %v1304, %v1307
    %vm1309 = vcmp.lt.s32.totalorder %v1308, 0
    %v1310 = vsub.s32 0, %v1308
    %v1311 = vsel %vm1309, %v1310, %v1308
    %v1312 = vclz %v1311
    %v1313 = vsub.s32 %v1312, 2
    %vm1314 = vcmp.gt.s32.totalorder 0, %v1313
    %v1315 = vsel %vm1314, 0, %v1313
    %v1316 = vsub.s32 32, %v1315
    %v1317 = vshll.u32 %v1308, %v1315
    %v1318 = vshrl.u32 %v1300, %v1316
    %v1319 = vor.u32 %v1317, %v1318
    %v1320 = vsub.s32 4294967266, %v1315
    %v1321 = vadd.s32 %v1320, 127
    %v1322 = vshll.u32 %v1321, 23
    %v1323 = vor.u32 4788187, %v1322
    %v1324 = vand.u32 2147483647, %v1323
    %v1326 = vcvt.s32.f32 %v1319
    %v1327 = vmul.f32 %v1326, %v1324
    %v1328 = vxor.u32 %v1327, 2147483648
    %v1329 = vsel %vm1246, %v1328, %v1327
    %v1330 = vsub.s32 4, %v1306
    %v1331 = vsel %vm1246, %v1330, %v1306
    %v1332 = vsel %vm1245, %v1036, %v1329
    %v1333 = vsel %vm1245, 0, %v1331
    %v1334 = vcosq.f32.pop %v1332
    %v1335 = vsinq.f32.pop %v1332
    %vm1336 = vweird.f32 %v1036
    %v1337 = vand.u32 %v1333, 3
    %vm1338 = vcmp.lt.s32.totalorder %v1337, 2
    %vm1339 = vcmp.eq.s32.totalorder %v1337, 0
    %v1340 = vxor.u32 %v1335, 2147483648
    %v1341 = vsel %vm1339, %v1334, %v1340
    %vm1342 = vcmp.eq.s32.totalorder %v1337, 2
    %v1343 = vxor.u32 %v1334, 2147483648
    %v1344 = vsel %vm1342, %v1343, %v1335
    %v1345 = vsel %vm1338, %v1341, %v1344
    %v1346 = vsel %vm1336, nan, %v1345
    %v1347 = vand.u32 2147483647, %v1037
    %vm1348 = vcmp.le.f32.partialorder %v1347, 0.7853982
    %vm1349 = vcmp.lt.s32.totalorder %v1037, 0
    %v1350 = vand.u32 %v1037, 2139095040
    %v1351 = vshrl.u32 %v1350, 23
    %v1352 = vsub.s32 %v1351, 127
    %v1353 = vand.u32 2147483647, %v1037
    %v1354 = vand.u32 %v1353, 8388607
    %v1355 = vor.u32 %v1354, 8388608
    %v1356 = vsub.s32 0, %v1355
    %v1357 = vadd.s32 %v1352, 1
    %vm1358 = vcmp.gt.s32.totalorder %v1357, 0
    %v1359 = vsel %vm1358, %v1357, 0
    %v1360 = vshrl.u32 %v1359, 5
    %v1361 = vand.u32 %v1359, 31
    %v1362 = vsub.s32 32, %v1361
    %v1363 = vshrl.u32 683565275, %v1362
    %v1364 = vshll.u32 683565275, %v1361
    %v1365 = vshrl.u32 2475754826, %v1362
    %v1366 = vor.u32 %v1364, %v1365
    %v1367 = vshll.u32 2475754826, %v1361
    %v1368 = vshrl.u32 2131351028, %v1362
    %v1369 = vor.u32 %v1367, %v1368
    %v1370 = vshll.u32 2131351028, %v1361
    %v1371 = vshrl.u32 2102212464, %v1362
    %v1372 = vor.u32 %v1370, %v1371
    %v1373 = vshll.u32 2102212464, %v1361
    %v1374 = vshrl.u32 920167782, %v1362
    %v1375 = vor.u32 %v1373, %v1374
    %v1376 = vshll.u32 920167782, %v1361
    %v1377 = vshrl.u32 1326507024, %v1362
    %v1378 = vor.u32 %v1376, %v1377
    %vm1379 = vcmp.lt.s32.totalorder %v1360, 1
    %vm1380 = vcmp.lt.s32.totalorder %v1360, 2
    %vm1381 = vcmp.lt.s32.totalorder %v1360, 3
    %vm1382 = vcmp.lt.s32.totalorder %v1360, 4
    %v1383 = vsel %vm1379, %v1363, %v1366
    %v1384 = vsel %vm1382, %v1372, 2102212464
    %v1385 = vsel %vm1381, %v1369, %v1384
    %v1386 = vsel %vm1380, %v1383, %v1385
    %v1387 = vsel %vm1379, %v1366, %v1369
    %v1388 = vsel %vm1382, %v1375, 920167782
    %v1389 = vsel %vm1381, %v1372, %v1388
    %v1390 = vsel %vm1380, %v1387, %v1389
    %v1391 = vsel %vm1379, %v1369, %v1372
    %v1392 = vsel %vm1382, %v1378, 1326507024
    %v1393 = vsel %vm1381, %v1375, %v1392
    %v1394 = vsel %vm1380, %v1391, %v1393
    %v1395 = vshll.u32 %v1355, 8
    %v1396 = vmul.u32.u64.compose %v1395, %v1394
    %v1397 = vextract.low.u32 %v1396
    %v1398 = vextract.high.u32 %v1396
    %v1399 = vmul.u32.u64.compose %v1395, %v1390
    %v1400 = vextract.low.u32 %v1399
    %v1401 = vextract.high.u32 %v1399
    %v1402 = vmul.u32 %v1395, %v1386
    %v1403 = vadd.s32 %v1398, %v1400
    %vm1404 = vc.u32 %v1398, %v1400
    %v1405 = vadd.s32 %v1401, 1
    %v1406 = vsel %vm1404, %v1405, %v1401
    %v1407 = vadd.s32 %v1402, %v1406
    %v1408 = vadd.s32 %v1407, 536870912
    %v1409 = vshrl.u32 %v1408, 30
    %v1410 = vshll.u32 %v1409, 30
    %v1411 = vsub.s32 %v1407, %v1410
    %vm1412 = vcmp.lt.s32.totalorder %v1411, 0
    %v1413 = vsub.s32 0, %v1411
    %v1414 = vsel %vm1412, %v1413, %v1411
    %v1415 = vclz %v1414
    %v1416 = vsub.s32 %v1415, 2
    %vm1417 = vcmp.gt.s32.totalorder 0, %v1416
    %v1418 = vsel %vm1417, 0, %v1416
    %v1419 = vsub.s32 32, %v1418
    %v1420 = vshll.u32 %v1411, %v1418
    %v1421 = vshrl.u32 %v1403, %v1419
    %v1422 = vor.u32 %v1420, %v1421
    %v1423 = vsub.s32 4294967266, %v1418
    %v1424 = vadd.s32 %v1423, 127
    %v1425 = vshll.u32 %v1424, 23
    %v1426 = vor.u32 4788187, %v1425
    %v1427 = vand.u32 2147483647, %v1426
    %v1429 = vcvt.s32.f32 %v1422
    %v1430 = vmul.f32 %v1429, %v1427
    %v1431 = vxor.u32 %v1430, 2147483648
    %v1432 = vsel %vm1349, %v1431, %v1430
    %v1433 = vsub.s32 4, %v1409
    %v1434 = vsel %vm1349, %v1433, %v1409
    %v1435 = vsel %vm1348, %v1037, %v1432
    %v1436 = vsel %vm1348, 0, %v1434
    %v1437 = vcosq.f32.pop %v1435
    %v1438 = vsinq.f32.pop %v1435
    %vm1439 = vweird.f32 %v1037
    %v1440 = vand.u32 %v1436, 3
    %vm1441 = vcmp.lt.s32.totalorder %v1440, 2
    %vm1442 = vcmp.eq.s32.totalorder %v1440, 0
    %v1443 = vxor.u32 %v1438, 2147483648
    %v1444 = vsel %vm1442, %v1437, %v1443
    %vm1445 = vcmp.eq.s32.totalorder %v1440, 2
    %v1446 = vxor.u32 %v1437, 2147483648
    %v1447 = vsel %vm1445, %v1446, %v1438
    %v1448 = vsel %vm1441, %v1444, %v1447
    %v1449 = vsel %vm1439, nan, %v1448
    %v1450 = vmul.f32 %v1025, %v1140
    %v1451 = vmul.f32 %v1026, %v1243
    %v1452 = vmul.f32 %v1027, %v1346
    %v1453 = vmul.f32 %v1028, %v1449
    %v1454 = vand.u32 2147483647, %v1034
    %vm1455 = vcmp.le.f32.partialorder %v1454, 0.7853982
    %vm1456 = vcmp.lt.s32.totalorder %v1034, 0
    %v1457 = vand.u32 %v1034, 2139095040
    %v1458 = vshrl.u32 %v1457, 23
    %v1459 = vsub.s32 %v1458, 127
    %v1460 = vand.u32 2147483647, %v1034
    %v1461 = vand.u32 %v1460, 8388607
    %v1462 = vor.u32 %v1461, 8388608
    %v1463 = vsub.s32 0, %v1462
    %v1464 = vadd.s32 %v1459, 1
    %vm1465 = vcmp.gt.s32.totalorder %v1464, 0
    %v1466 = vsel %vm1465, %v1464, 0
    %v1467 = vshrl.u32 %v1466, 5
    %v1468 = vand.u32 %v1466, 31
    %v1469 = vsub.s32 32, %v1468
    %v1470 = vshrl.u32 683565275, %v1469
    %v1471 = vshll.u32 683565275, %v1468
    %v1472 = vshrl.u32 2475754826, %v1469
    %v1473 = vor.u32 %v1471, %v1472
    %v1474 = vshll.u32 2475754826, %v1468
    %v1475 = vshrl.u32 2131351028, %v1469
    %v1476 = vor.u32 %v1474, %v1475
    %v1477 = vshll.u32 2131351028, %v1468
    %v1478 = vshrl.u32 2102212464, %v1469
    %v1479 = vor.u32 %v1477, %v1478
    %v1480 = vshll.u32 2102212464, %v1468
    %v1481 = vshrl.u32 920167782, %v1469
    %v1482 = vor.u32 %v1480, %v1481
    %v1483 = vshll.u32 920167782, %v1468
    %v1484 = vshrl.u32 1326507024, %v1469
    %v1485 = vor.u32 %v1483, %v1484
    %vm1486 = vcmp.lt.s32.totalorder %v1467, 1
    %vm1487 = vcmp.lt.s32.totalorder %v1467, 2
    %vm1488 = vcmp.lt.s32.totalorder %v1467, 3
    %vm1489 = vcmp.lt.s32.totalorder %v1467, 4
    %v1490 = vsel %vm1486, %v1470, %v1473
    %v1491 = vsel %vm1489, %v1479, 2102212464
    %v1492 = vsel %vm1488, %v1476, %v1491
    %v1493 = vsel %vm1487, %v1490, %v1492
    %v1494 = vsel %vm1486, %v1473, %v1476
    %v1495 = vsel %vm1489, %v1482, 920167782
    %v1496 = vsel %vm1488, %v1479, %v1495
    %v1497 = vsel %vm1487, %v1494, %v1496
    %v1498 = vsel %vm1486, %v1476, %v1479
    %v1499 = vsel %vm1489, %v1485, 1326507024
    %v1500 = vsel %vm1488, %v1482, %v1499
    %v1501 = vsel %vm1487, %v1498, %v1500
    %v1502 = vshll.u32 %v1462, 8
    %v1503 = vmul.u32.u64.compose %v1502, %v1501
    %v1504 = vextract.low.u32 %v1503
    %v1505 = vextract.high.u32 %v1503
    %v1506 = vmul.u32.u64.compose %v1502, %v1497
    %v1507 = vextract.low.u32 %v1506
    %v1508 = vextract.high.u32 %v1506
    %v1509 = vmul.u32 %v1502, %v1493
    %v1510 = vadd.s32 %v1505, %v1507
    %vm1511 = vc.u32 %v1505, %v1507
    %v1512 = vadd.s32 %v1508, 1
    %v1513 = vsel %vm1511, %v1512, %v1508
    %v1514 = vadd.s32 %v1509, %v1513
    %v1515 = vadd.s32 %v1514, 536870912
    %v1516 = vshrl.u32 %v1515, 30
    %v1517 = vshll.u32 %v1516, 30
    %v1518 = vsub.s32 %v1514, %v1517
    %vm1519 = vcmp.lt.s32.totalorder %v1518, 0
    %v1520 = vsub.s32 0, %v1518
    %v1521 = vsel %vm1519, %v1520, %v1518
    %v1522 = vclz %v1521
    %v1523 = vsub.s32 %v1522, 2
    %vm1524 = vcmp.gt.s32.totalorder 0, %v1523
    %v1525 = vsel %vm1524, 0, %v1523
    %v1526 = vsub.s32 32, %v1525
    %v1527 = vshll.u32 %v1518, %v1525
    %v1528 = vshrl.u32 %v1510, %v1526
    %v1529 = vor.u32 %v1527, %v1528
    %v1530 = vsub.s32 4294967266, %v1525
    %v1531 = vadd.s32 %v1530, 127
    %v1532 = vshll.u32 %v1531, 23
    %v1533 = vor.u32 4788187, %v1532
    %v1534 = vand.u32 2147483647, %v1533
    %v1536 = vcvt.s32.f32 %v1529
    %v1537 = vmul.f32 %v1536, %v1534
    %v1538 = vxor.u32 %v1537, 2147483648
    %v1539 = vsel %vm1456, %v1538, %v1537
    %v1540 = vsub.s32 4, %v1516
    %v1541 = vsel %vm1456, %v1540, %v1516
    %v1542 = vsel %vm1455, %v1034, %v1539
    %v1543 = vsel %vm1455, 0, %v1541
    %v1544 = vcosq.f32.pop %v1542
    %v1545 = vsinq.f32.pop %v1542
    %vm1546 = vweird.f32 %v1034
    %v1547 = vadd.s32 %v1543, 3
    %v1548 = vand.u32 %v1547, 3
    %vm1549 = vcmp.lt.s32.totalorder %v1548, 2
    %vm1550 = vcmp.eq.s32.totalorder %v1548, 0
    %v1551 = vxor.u32 %v1545, 2147483648
    %v1552 = vsel %vm1550, %v1544, %v1551
    %vm1553 = vcmp.eq.s32.totalorder %v1548, 2
    %v1554 = vxor.u32 %v1544, 2147483648
    %v1555 = vsel %vm1553, %v1554, %v1545
    %v1556 = vsel %vm1549, %v1552, %v1555
    %v1557 = vsel %vm1546, nan, %v1556
    %v1558 = vand.u32 2147483647, %v1035
    %vm1559 = vcmp.le.f32.partialorder %v1558, 0.7853982
    %vm1560 = vcmp.lt.s32.totalorder %v1035, 0
    %v1561 = vand.u32 %v1035, 2139095040
    %v1562 = vshrl.u32 %v1561, 23
    %v1563 = vsub.s32 %v1562, 127
    %v1564 = vand.u32 2147483647, %v1035
    %v1565 = vand.u32 %v1564, 8388607
    %v1566 = vor.u32 %v1565, 8388608
    %v1567 = vsub.s32 0, %v1566
    %v1568 = vadd.s32 %v1563, 1
    %vm1569 = vcmp.gt.s32.totalorder %v1568, 0
    %v1570 = vsel %vm1569, %v1568, 0
    %v1571 = vshrl.u32 %v1570, 5
    %v1572 = vand.u32 %v1570, 31
    %v1573 = vsub.s32 32, %v1572
    %v1574 = vshrl.u32 683565275, %v1573
    %v1575 = vshll.u32 683565275, %v1572
    %v1576 = vshrl.u32 2475754826, %v1573
    %v1577 = vor.u32 %v1575, %v1576
    %v1578 = vshll.u32 2475754826, %v1572
    %v1579 = vshrl.u32 2131351028, %v1573
    %v1580 = vor.u32 %v1578, %v1579
    %v1581 = vshll.u32 2131351028, %v1572
    %v1582 = vshrl.u32 2102212464, %v1573
    %v1583 = vor.u32 %v1581, %v1582
    %v1584 = vshll.u32 2102212464, %v1572
    %v1585 = vshrl.u32 920167782, %v1573
    %v1586 = vor.u32 %v1584, %v1585
    %v1587 = vshll.u32 920167782, %v1572
    %v1588 = vshrl.u32 1326507024, %v1573
    %v1589 = vor.u32 %v1587, %v1588
    %vm1590 = vcmp.lt.s32.totalorder %v1571, 1
    %vm1591 = vcmp.lt.s32.totalorder %v1571, 2
    %vm1592 = vcmp.lt.s32.totalorder %v1571, 3
    %vm1593 = vcmp.lt.s32.totalorder %v1571, 4
    %v1594 = vsel %vm1590, %v1574, %v1577
    %v1595 = vsel %vm1593, %v1583, 2102212464
    %v1596 = vsel %vm1592, %v1580, %v1595
    %v1597 = vsel %vm1591, %v1594, %v1596
    %v1598 = vsel %vm1590, %v1577, %v1580
    %v1599 = vsel %vm1593, %v1586, 920167782
    %v1600 = vsel %vm1592, %v1583, %v1599
    %v1601 = vsel %vm1591, %v1598, %v1600
    %v1602 = vsel %vm1590, %v1580, %v1583
    %v1603 = vsel %vm1593, %v1589, 1326507024
    %v1604 = vsel %vm1592, %v1586, %v1603
    %v1605 = vsel %vm1591, %v1602, %v1604
    %v1606 = vshll.u32 %v1566, 8
    %v1607 = vmul.u32.u64.compose %v1606, %v1605
    %v1608 = vextract.low.u32 %v1607
    %v1609 = vextract.high.u32 %v1607
    %v1610 = vmul.u32.u64.compose %v1606, %v1601
    %v1611 = vextract.low.u32 %v1610
    %v1612 = vextract.high.u32 %v1610
    %v1613 = vmul.u32 %v1606, %v1597
    %v1614 = vadd.s32 %v1609, %v1611
    %vm1615 = vc.u32 %v1609, %v1611
    %v1616 = vadd.s32 %v1612, 1
    %v1617 = vsel %vm1615, %v1616, %v1612
    %v1618 = vadd.s32 %v1613, %v1617
    %v1619 = vadd.s32 %v1618, 536870912
    %v1620 = vshrl.u32 %v1619, 30
    %v1621 = vshll.u32 %v1620, 30
    %v1622 = vsub.s32 %v1618, %v1621
    %vm1623 = vcmp.lt.s32.totalorder %v1622, 0
    %v1624 = vsub.s32 0, %v1622
    %v1625 = vsel %vm1623, %v1624, %v1622
    %v1626 = vclz %v1625
    %v1627 = vsub.s32 %v1626, 2
    %vm1628 = vcmp.gt.s32.totalorder 0, %v1627
    %v1629 = vsel %vm1628, 0, %v1627
    %v1630 = vsub.s32 32, %v1629
    %v1631 = vshll.u32 %v1622, %v1629
    %v1632 = vshrl.u32 %v1614, %v1630
    %v1633 = vor.u32 %v1631, %v1632
    %v1634 = vsub.s32 4294967266, %v1629
    %v1635 = vadd.s32 %v1634, 127
    %v1636 = vshll.u32 %v1635, 23
    %v1637 = vor.u32 4788187, %v1636
    %v1638 = vand.u32 2147483647, %v1637
    %v1640 = vcvt.s32.f32 %v1633
    %v1641 = vmul.f32 %v1640, %v1638
    %v1642 = vxor.u32 %v1641, 2147483648
    %v1643 = vsel %vm1560, %v1642, %v1641
    %v1644 = vsub.s32 4, %v1620
    %v1645 = vsel %vm1560, %v1644, %v1620
    %v1646 = vsel %vm1559, %v1035, %v1643
    %v1647 = vsel %vm1559, 0, %v1645
    %v1648 = vcosq.f32.pop %v1646
    %v1649 = vsinq.f32.pop %v1646
    %vm1650 = vweird.f32 %v1035
    %v1651 = vadd.s32 %v1647, 3
    %v1652 = vand.u32 %v1651, 3
    %vm1653 = vcmp.lt.s32.totalorder %v1652, 2
    %vm1654 = vcmp.eq.s32.totalorder %v1652, 0
    %v1655 = vxor.u32 %v1649, 2147483648
    %v1656 = vsel %vm1654, %v1648, %v1655
    %vm1657 = vcmp.eq.s32.totalorder %v1652, 2
    %v1658 = vxor.u32 %v1648, 2147483648
    %v1659 = vsel %vm1657, %v1658, %v1649
    %v1660 = vsel %vm1653, %v1656, %v1659
    %v1661 = vsel %vm1650, nan, %v1660
    %v1662 = vand.u32 2147483647, %v1036
    %vm1663 = vcmp.le.f32.partialorder %v1662, 0.7853982
    %vm1664 = vcmp.lt.s32.totalorder %v1036, 0
    %v1665 = vand.u32 %v1036, 2139095040
    %v1666 = vshrl.u32 %v1665, 23
    %v1667 = vsub.s32 %v1666, 127
    %v1668 = vand.u32 2147483647, %v1036
    %v1669 = vand.u32 %v1668, 8388607
    %v1670 = vor.u32 %v1669, 8388608
    %v1671 = vsub.s32 0, %v1670
    %v1672 = vadd.s32 %v1667, 1
    %vm1673 = vcmp.gt.s32.totalorder %v1672, 0
    %v1674 = vsel %vm1673, %v1672, 0
    %v1675 = vshrl.u32 %v1674, 5
    %v1676 = vand.u32 %v1674, 31
    %v1677 = vsub.s32 32, %v1676
    %v1678 = vshrl.u32 683565275, %v1677
    %v1679 = vshll.u32 683565275, %v1676
    %v1680 = vshrl.u32 2475754826, %v1677
    %v1681 = vor.u32 %v1679, %v1680
    %v1682 = vshll.u32 2475754826, %v1676
    %v1683 = vshrl.u32 2131351028, %v1677
    %v1684 = vor.u32 %v1682, %v1683
    %v1685 = vshll.u32 2131351028, %v1676
    %v1686 = vshrl.u32 2102212464, %v1677
    %v1687 = vor.u32 %v1685, %v1686
    %v1688 = vshll.u32 2102212464, %v1676
    %v1689 = vshrl.u32 920167782, %v1677
    %v1690 = vor.u32 %v1688, %v1689
    %v1691 = vshll.u32 920167782, %v1676
    %v1692 = vshrl.u32 1326507024, %v1677
    %v1693 = vor.u32 %v1691, %v1692
    %vm1694 = vcmp.lt.s32.totalorder %v1675, 1
    %vm1695 = vcmp.lt.s32.totalorder %v1675, 2
    %vm1696 = vcmp.lt.s32.totalorder %v1675, 3
    %vm1697 = vcmp.lt.s32.totalorder %v1675, 4
    %v1698 = vsel %vm1694, %v1678, %v1681
    %v1699 = vsel %vm1697, %v1687, 2102212464
    %v1700 = vsel %vm1696, %v1684, %v1699
    %v1701 = vsel %vm1695, %v1698, %v1700
    %v1702 = vsel %vm1694, %v1681, %v1684
    %v1703 = vsel %vm1697, %v1690, 920167782
    %v1704 = vsel %vm1696, %v1687, %v1703
    %v1705 = vsel %vm1695, %v1702, %v1704
    %v1706 = vsel %vm1694, %v1684, %v1687
    %v1707 = vsel %vm1697, %v1693, 1326507024
    %v1708 = vsel %vm1696, %v1690, %v1707
    %v1709 = vsel %vm1695, %v1706, %v1708
    %v1710 = vshll.u32 %v1670, 8
    %v1711 = vmul.u32.u64.compose %v1710, %v1709
    %v1712 = vextract.low.u32 %v1711
    %v1713 = vextract.high.u32 %v1711
    %v1714 = vmul.u32.u64.compose %v1710, %v1705
    %v1715 = vextract.low.u32 %v1714
    %v1716 = vextract.high.u32 %v1714
    %v1717 = vmul.u32 %v1710, %v1701
    %v1718 = vadd.s32 %v1713, %v1715
    %vm1719 = vc.u32 %v1713, %v1715
    %v1720 = vadd.s32 %v1716, 1
    %v1721 = vsel %vm1719, %v1720, %v1716
    %v1722 = vadd.s32 %v1717, %v1721
    %v1723 = vadd.s32 %v1722, 536870912
    %v1724 = vshrl.u32 %v1723, 30
    %v1725 = vshll.u32 %v1724, 30
    %v1726 = vsub.s32 %v1722, %v1725
    %vm1727 = vcmp.lt.s32.totalorder %v1726, 0
    %v1728 = vsub.s32 0, %v1726
    %v1729 = vsel %vm1727, %v1728, %v1726
    %v1730 = vclz %v1729
    %v1731 = vsub.s32 %v1730, 2
    %vm1732 = vcmp.gt.s32.totalorder 0, %v1731
    %v1733 = vsel %vm1732, 0, %v1731
    %v1734 = vsub.s32 32, %v1733
    %v1735 = vshll.u32 %v1726, %v1733
    %v1736 = vshrl.u32 %v1718, %v1734
    %v1737 = vor.u32 %v1735, %v1736
    %v1738 = vsub.s32 4294967266, %v1733
    %v1739 = vadd.s32 %v1738, 127
    %v1740 = vshll.u32 %v1739, 23
    %v1741 = vor.u32 4788187, %v1740
    %v1742 = vand.u32 2147483647, %v1741
    %v1744 = vcvt.s32.f32 %v1737
    %v1745 = vmul.f32 %v1744, %v1742
    %v1746 = vxor.u32 %v1745, 2147483648
    %v1747 = vsel %vm1664, %v1746, %v1745
    %v1748 = vsub.s32 4, %v1724
    %v1749 = vsel %vm1664, %v1748, %v1724
    %v1750 = vsel %vm1663, %v1036, %v1747
    %v1751 = vsel %vm1663, 0, %v1749
    %v1752 = vcosq.f32.pop %v1750
    %v1753 = vsinq.f32.pop %v1750
    %vm1754 = vweird.f32 %v1036
    %v1755 = vadd.s32 %v1751, 3
    %v1756 = vand.u32 %v1755, 3
    %vm1757 = vcmp.lt.s32.totalorder %v1756, 2
    %vm1758 = vcmp.eq.s32.totalorder %v1756, 0
    %v1759 = vxor.u32 %v1753, 2147483648
    %v1760 = vsel %vm1758, %v1752, %v1759
    %vm1761 = vcmp.eq.s32.totalorder %v1756, 2
    %v1762 = vxor.u32 %v1752, 2147483648
    %v1763 = vsel %vm1761, %v1762, %v1753
    %v1764 = vsel %vm1757, %v1760, %v1763
    %v1765 = vsel %vm1754, nan, %v1764
    %v1766 = vand.u32 2147483647, %v1037
    %vm1767 = vcmp.le.f32.partialorder %v1766, 0.7853982
    %vm1768 = vcmp.lt.s32.totalorder %v1037, 0
    %v1769 = vand.u32 %v1037, 2139095040
    %v1770 = vshrl.u32 %v1769, 23
    %v1771 = vsub.s32 %v1770, 127
    %v1772 = vand.u32 2147483647, %v1037
    %v1773 = vand.u32 %v1772, 8388607
    %v1774 = vor.u32 %v1773, 8388608
    %v1775 = vsub.s32 0, %v1774
    %v1776 = vadd.s32 %v1771, 1
    %vm1777 = vcmp.gt.s32.totalorder %v1776, 0
    %v1778 = vsel %vm1777, %v1776, 0
    %v1779 = vshrl.u32 %v1778, 5
    %v1780 = vand.u32 %v1778, 31
    %v1781 = vsub.s32 32, %v1780
    %v1782 = vshrl.u32 683565275, %v1781
    %v1783 = vshll.u32 683565275, %v1780
    %v1784 = vshrl.u32 2475754826, %v1781
    %v1785 = vor.u32 %v1783, %v1784
    %v1786 = vshll.u32 2475754826, %v1780
    %v1787 = vshrl.u32 2131351028, %v1781
    %v1788 = vor.u32 %v1786, %v1787
    %v1789 = vshll.u32 2131351028, %v1780
    %v1790 = vshrl.u32 2102212464, %v1781
    %v1791 = vor.u32 %v1789, %v1790
    %v1792 = vshll.u32 2102212464, %v1780
    %v1793 = vshrl.u32 920167782, %v1781
    %v1794 = vor.u32 %v1792, %v1793
    %v1795 = vshll.u32 920167782, %v1780
    %v1796 = vshrl.u32 1326507024, %v1781
    %v1797 = vor.u32 %v1795, %v1796
    %vm1798 = vcmp.lt.s32.totalorder %v1779, 1
    %vm1799 = vcmp.lt.s32.totalorder %v1779, 2
    %vm1800 = vcmp.lt.s32.totalorder %v1779, 3
    %vm1801 = vcmp.lt.s32.totalorder %v1779, 4
    %v1802 = vsel %vm1798, %v1782, %v1785
    %v1803 = vsel %vm1801, %v1791, 2102212464
    %v1804 = vsel %vm1800, %v1788, %v1803
    %v1805 = vsel %vm1799, %v1802, %v1804
    %v1806 = vsel %vm1798, %v1785, %v1788
    %v1807 = vsel %vm1801, %v1794, 920167782
    %v1808 = vsel %vm1800, %v1791, %v1807
    %v1809 = vsel %vm1799, %v1806, %v1808
    %v1810 = vsel %vm1798, %v1788, %v1791
    %v1811 = vsel %vm1801, %v1797, 1326507024
    %v1812 = vsel %vm1800, %v1794, %v1811
    %v1813 = vsel %vm1799, %v1810, %v1812
    %v1814 = vshll.u32 %v1774, 8
    %v1815 = vmul.u32.u64.compose %v1814, %v1813
    %v1816 = vextract.low.u32 %v1815
    %v1817 = vextract.high.u32 %v1815
    %v1818 = vmul.u32.u64.compose %v1814, %v1809
    %v1819 = vextract.low.u32 %v1818
    %v1820 = vextract.high.u32 %v1818
    %v1821 = vmul.u32 %v1814, %v1805
    %v1822 = vadd.s32 %v1817, %v1819
    %vm1823 = vc.u32 %v1817, %v1819
    %v1824 = vadd.s32 %v1820, 1
    %v1825 = vsel %vm1823, %v1824, %v1820
    %v1826 = vadd.s32 %v1821, %v1825
    %v1827 = vadd.s32 %v1826, 536870912
    %v1828 = vshrl.u32 %v1827, 30
    %v1829 = vshll.u32 %v1828, 30
    %v1830 = vsub.s32 %v1826, %v1829
    %vm1831 = vcmp.lt.s32.totalorder %v1830, 0
    %v1832 = vsub.s32 0, %v1830
    %v1833 = vsel %vm1831, %v1832, %v1830
    %v1834 = vclz %v1833
    %v1835 = vsub.s32 %v1834, 2
    %vm1836 = vcmp.gt.s32.totalorder 0, %v1835
    %v1837 = vsel %vm1836, 0, %v1835
    %v1838 = vsub.s32 32, %v1837
    %v1839 = vshll.u32 %v1830, %v1837
    %v1840 = vshrl.u32 %v1822, %v1838
    %v1841 = vor.u32 %v1839, %v1840
    %v1842 = vsub.s32 4294967266, %v1837
    %v1843 = vadd.s32 %v1842, 127
    %v1844 = vshll.u32 %v1843, 23
    %v1845 = vor.u32 4788187, %v1844
    %v1846 = vand.u32 2147483647, %v1845
    %v1848 = vcvt.s32.f32 %v1841
    %v1849 = vmul.f32 %v1848, %v1846
    %v1850 = vxor.u32 %v1849, 2147483648
    %v1851 = vsel %vm1768, %v1850, %v1849
    %v1852 = vsub.s32 4, %v1828
    %v1853 = vsel %vm1768, %v1852, %v1828
    %v1854 = vsel %vm1767, %v1037, %v1851
    %v1855 = vsel %vm1767, 0, %v1853
    %v1856 = vcosq.f32.pop %v1854
    %v1857 = vsinq.f32.pop %v1854
    %vm1858 = vweird.f32 %v1037
    %v1859 = vadd.s32 %v1855, 3
    %v1860 = vand.u32 %v1859, 3
    %vm1861 = vcmp.lt.s32.totalorder %v1860, 2
    %vm1862 = vcmp.eq.s32.totalorder %v1860, 0
    %v1863 = vxor.u32 %v1857, 2147483648
    %v1864 = vsel %vm1862, %v1856, %v1863
    %vm1865 = vcmp.eq.s32.totalorder %v1860, 2
    %v1866 = vxor.u32 %v1856, 2147483648
    %v1867 = vsel %vm1865, %v1866, %v1857
    %v1868 = vsel %vm1861, %v1864, %v1867
    %v1869 = vsel %vm1858, nan, %v1868
    %v1870 = vmul.f32 %v1029, %v1557
    %v1871 = vmul.f32 %v1030, %v1661
    %v1872 = vmul.f32 %v1031, %v1765
    %v1873 = vmul.f32 %v1032, %v1869
    %v1874 = vadd.f32 %v1450, %v1870
    %v1875 = vadd.f32 %v1451, %v1871
    %v1876 = vadd.f32 %v1452, %v1872
    %v1877 = vadd.f32 %v1453, %v1873
    %v1878 = vmul.f32 %v1025, %v1025
    %v1879 = vmul.f32 %v1026, %v1026
    %v1880 = vmul.f32 %v1027, %v1027
    %v1881 = vmul.f32 %v1028, %v1028
    %v1882 = vmul.f32 %v1029, %v1029
    %v1883 = vmul.f32 %v1030, %v1030
    %v1884 = vmul.f32 %v1031, %v1031
    %v1885 = vmul.f32 %v1032, %v1032
    %v1886 = vadd.f32 %v1878, %v1882
    %v1887 = vadd.f32 %v1879, %v1883
    %v1888 = vadd.f32 %v1880, %v1884
    %v1889 = vadd.f32 %v1881, %v1885
    %v1890 = vadd.f32 %v1886, 1e-30
    %v1891 = vadd.f32 %v1887, 1e-30
    %v1892 = vadd.f32 %v1888, 1e-30
    %v1893 = vadd.f32 %v1889, 1e-30
    %v1894 = vrsqrt.pop %v1890
    %v1895 = vrsqrt.pop %v1891
    %v1896 = vrsqrt.pop %v1892
    %v1897 = vrsqrt.pop %v1893
    %v1898 = vmul.f32 %v1874, %v1894
    %v1899 = vmul.f32 %v1875, %v1895
    %v1900 = vmul.f32 %v1876, %v1896
    %v1901 = vmul.f32 %v1877, %v1897
    %v1902 = vsub.f32 1.0, %v1898
    %v1903 = vsub.f32 1.0, %v1899
    %v1904 = vsub.f32 1.0, %v1900
    %v1905 = vsub.f32 1.0, %v1901
    %v1906 = vadd.f32 %v993, %v1902
    %v1907 = vadd.f32 %v994, %v1903
    %v1908 = vadd.f32 %v995, %v1904
    %v1909 = vadd.f32 %v996, %v1905
    %s1910 = sadd.s32 0, 256
    %s1911 = scalar_lea.vmem [#allocation6], %s1910
    %v1912 = vld [vmem:[%s1911] sm:$0xff]
    %v1913 = vld [vmem:[%s1911 + $0x8] sm:$0xff]
    %v1914 = vld [vmem:[%s1911 + $0x10] sm:$0xff]
    %v1915 = vld [vmem:[%s1911 + $0x18] sm:$0xff]
    %s1916 = sadd.s32 0, 288
    %s1917 = scalar_lea.vmem [#allocation6], %s1916
    %v1918 = vld [vmem:[%s1917] sm:$0xff]
    %v1919 = vld [vmem:[%s1917 + $0x8] sm:$0xff]
    %v1920 = vld [vmem:[%s1917 + $0x10] sm:$0xff]
    %v1921 = vld [vmem:[%s1917 + $0x18] sm:$0xff]
    %s1922 = sadd.s32 0, 320
    %s1923 = scalar_lea.vmem [#allocation6], %s1922
    %v1924 = vld [vmem:[%s1923] sm:$0xff]
    %v1925 = vld [vmem:[%s1923 + $0x8] sm:$0xff]
    %v1926 = vld [vmem:[%s1923 + $0x10] sm:$0xff]
    %v1927 = vld [vmem:[%s1923 + $0x18] sm:$0xff]
    %s1928 = sadd.s32 0, 352
    %s1929 = scalar_lea.vmem [#allocation6], %s1928
    %v1930 = vld [vmem:[%s1929] sm:$0xff]
    %v1931 = vld [vmem:[%s1929 + $0x8] sm:$0xff]
    %v1932 = vld [vmem:[%s1929 + $0x10] sm:$0xff]
    %v1933 = vld [vmem:[%s1929 + $0x18] sm:$0xff]
    %v1934 = vsub.f32 %v1912, %v1924
    %v1935 = vsub.f32 %v1913, %v1925
    %v1936 = vsub.f32 %v1914, %v1926
    %v1937 = vsub.f32 %v1915, %v1927
    %v1938 = vadd.f32 %v1934, 1e-08
    %v1939 = vadd.f32 %v1935, 1e-08
    %v1940 = vadd.f32 %v1936, 1e-08
    %v1941 = vadd.f32 %v1937, 1e-08
    %v1942 = vsub.f32 %v1930, %v1918
    %v1943 = vsub.f32 %v1931, %v1919
    %v1944 = vsub.f32 %v1932, %v1920
    %v1945 = vsub.f32 %v1933, %v1921
    %v1946 = vstv %s71
    %v1947 = vmul.f32 %v1946, %v82
    %v1948 = vmul.f32 %v1946, %v83
    %v1949 = vmul.f32 %v1946, %v84
    %v1950 = vmul.f32 %v1946, %v85
    %v1951 = vand.u32 2147483647, %v1947
    %vm1952 = vcmp.le.f32.partialorder %v1951, 0.7853982
    %vm1953 = vcmp.lt.s32.totalorder %v1947, 0
    %v1954 = vand.u32 %v1947, 2139095040
    %v1955 = vshrl.u32 %v1954, 23
    %v1956 = vsub.s32 %v1955, 127
    %v1957 = vand.u32 2147483647, %v1947
    %v1958 = vand.u32 %v1957, 8388607
    %v1959 = vor.u32 %v1958, 8388608
    %v1960 = vsub.s32 0, %v1959
    %v1961 = vadd.s32 %v1956, 1
    %vm1962 = vcmp.gt.s32.totalorder %v1961, 0
    %v1963 = vsel %vm1962, %v1961, 0
    %v1964 = vshrl.u32 %v1963, 5
    %v1965 = vand.u32 %v1963, 31
    %v1966 = vsub.s32 32, %v1965
    %v1967 = vshrl.u32 683565275, %v1966
    %v1968 = vshll.u32 683565275, %v1965
    %v1969 = vshrl.u32 2475754826, %v1966
    %v1970 = vor.u32 %v1968, %v1969
    %v1971 = vshll.u32 2475754826, %v1965
    %v1972 = vshrl.u32 2131351028, %v1966
    %v1973 = vor.u32 %v1971, %v1972
    %v1974 = vshll.u32 2131351028, %v1965
    %v1975 = vshrl.u32 2102212464, %v1966
    %v1976 = vor.u32 %v1974, %v1975
    %v1977 = vshll.u32 2102212464, %v1965
    %v1978 = vshrl.u32 920167782, %v1966
    %v1979 = vor.u32 %v1977, %v1978
    %v1980 = vshll.u32 920167782, %v1965
    %v1981 = vshrl.u32 1326507024, %v1966
    %v1982 = vor.u32 %v1980, %v1981
    %vm1983 = vcmp.lt.s32.totalorder %v1964, 1
    %vm1984 = vcmp.lt.s32.totalorder %v1964, 2
    %vm1985 = vcmp.lt.s32.totalorder %v1964, 3
    %vm1986 = vcmp.lt.s32.totalorder %v1964, 4
    %v1987 = vsel %vm1983, %v1967, %v1970
    %v1988 = vsel %vm1986, %v1976, 2102212464
    %v1989 = vsel %vm1985, %v1973, %v1988
    %v1990 = vsel %vm1984, %v1987, %v1989
    %v1991 = vsel %vm1983, %v1970, %v1973
    %v1992 = vsel %vm1986, %v1979, 920167782
    %v1993 = vsel %vm1985, %v1976, %v1992
    %v1994 = vsel %vm1984, %v1991, %v1993
    %v1995 = vsel %vm1983, %v1973, %v1976
    %v1996 = vsel %vm1986, %v1982, 1326507024
    %v1997 = vsel %vm1985, %v1979, %v1996
    %v1998 = vsel %vm1984, %v1995, %v1997
    %v1999 = vshll.u32 %v1959, 8
    %v2000 = vmul.u32.u64.compose %v1999, %v1998
    %v2001 = vextract.low.u32 %v2000
    %v2002 = vextract.high.u32 %v2000
    %v2003 = vmul.u32.u64.compose %v1999, %v1994
    %v2004 = vextract.low.u32 %v2003
    %v2005 = vextract.high.u32 %v2003
    %v2006 = vmul.u32 %v1999, %v1990
    %v2007 = vadd.s32 %v2002, %v2004
    %vm2008 = vc.u32 %v2002, %v2004
    %v2009 = vadd.s32 %v2005, 1
    %v2010 = vsel %vm2008, %v2009, %v2005
    %v2011 = vadd.s32 %v2006, %v2010
    %v2012 = vadd.s32 %v2011, 536870912
    %v2013 = vshrl.u32 %v2012, 30
    %v2014 = vshll.u32 %v2013, 30
    %v2015 = vsub.s32 %v2011, %v2014
    %vm2016 = vcmp.lt.s32.totalorder %v2015, 0
    %v2017 = vsub.s32 0, %v2015
    %v2018 = vsel %vm2016, %v2017, %v2015
    %v2019 = vclz %v2018
    %v2020 = vsub.s32 %v2019, 2
    %vm2021 = vcmp.gt.s32.totalorder 0, %v2020
    %v2022 = vsel %vm2021, 0, %v2020
    %v2023 = vsub.s32 32, %v2022
    %v2024 = vshll.u32 %v2015, %v2022
    %v2025 = vshrl.u32 %v2007, %v2023
    %v2026 = vor.u32 %v2024, %v2025
    %v2027 = vsub.s32 4294967266, %v2022
    %v2028 = vadd.s32 %v2027, 127
    %v2029 = vshll.u32 %v2028, 23
    %v2030 = vor.u32 4788187, %v2029
    %v2031 = vand.u32 2147483647, %v2030
    %v2033 = vcvt.s32.f32 %v2026
    %v2034 = vmul.f32 %v2033, %v2031
    %v2035 = vxor.u32 %v2034, 2147483648
    %v2036 = vsel %vm1953, %v2035, %v2034
    %v2037 = vsub.s32 4, %v2013
    %v2038 = vsel %vm1953, %v2037, %v2013
    %v2039 = vsel %vm1952, %v1947, %v2036
    %v2040 = vsel %vm1952, 0, %v2038
    %v2041 = vcosq.f32.pop %v2039
    %v2042 = vsinq.f32.pop %v2039
    %vm2043 = vweird.f32 %v1947
    %v2044 = vand.u32 %v2040, 3
    %vm2045 = vcmp.lt.s32.totalorder %v2044, 2
    %vm2046 = vcmp.eq.s32.totalorder %v2044, 0
    %v2047 = vxor.u32 %v2042, 2147483648
    %v2048 = vsel %vm2046, %v2041, %v2047
    %vm2049 = vcmp.eq.s32.totalorder %v2044, 2
    %v2050 = vxor.u32 %v2041, 2147483648
    %v2051 = vsel %vm2049, %v2050, %v2042
    %v2052 = vsel %vm2045, %v2048, %v2051
    %v2053 = vsel %vm2043, nan, %v2052
    %v2054 = vand.u32 2147483647, %v1948
    %vm2055 = vcmp.le.f32.partialorder %v2054, 0.7853982
    %vm2056 = vcmp.lt.s32.totalorder %v1948, 0
    %v2057 = vand.u32 %v1948, 2139095040
    %v2058 = vshrl.u32 %v2057, 23
    %v2059 = vsub.s32 %v2058, 127
    %v2060 = vand.u32 2147483647, %v1948
    %v2061 = vand.u32 %v2060, 8388607
    %v2062 = vor.u32 %v2061, 8388608
    %v2063 = vsub.s32 0, %v2062
    %v2064 = vadd.s32 %v2059, 1
    %vm2065 = vcmp.gt.s32.totalorder %v2064, 0
    %v2066 = vsel %vm2065, %v2064, 0
    %v2067 = vshrl.u32 %v2066, 5
    %v2068 = vand.u32 %v2066, 31
    %v2069 = vsub.s32 32, %v2068
    %v2070 = vshrl.u32 683565275, %v2069
    %v2071 = vshll.u32 683565275, %v2068
    %v2072 = vshrl.u32 2475754826, %v2069
    %v2073 = vor.u32 %v2071, %v2072
    %v2074 = vshll.u32 2475754826, %v2068
    %v2075 = vshrl.u32 2131351028, %v2069
    %v2076 = vor.u32 %v2074, %v2075
    %v2077 = vshll.u32 2131351028, %v2068
    %v2078 = vshrl.u32 2102212464, %v2069
    %v2079 = vor.u32 %v2077, %v2078
    %v2080 = vshll.u32 2102212464, %v2068
    %v2081 = vshrl.u32 920167782, %v2069
    %v2082 = vor.u32 %v2080, %v2081
    %v2083 = vshll.u32 920167782, %v2068
    %v2084 = vshrl.u32 1326507024, %v2069
    %v2085 = vor.u32 %v2083, %v2084
    %vm2086 = vcmp.lt.s32.totalorder %v2067, 1
    %vm2087 = vcmp.lt.s32.totalorder %v2067, 2
    %vm2088 = vcmp.lt.s32.totalorder %v2067, 3
    %vm2089 = vcmp.lt.s32.totalorder %v2067, 4
    %v2090 = vsel %vm2086, %v2070, %v2073
    %v2091 = vsel %vm2089, %v2079, 2102212464
    %v2092 = vsel %vm2088, %v2076, %v2091
    %v2093 = vsel %vm2087, %v2090, %v2092
    %v2094 = vsel %vm2086, %v2073, %v2076
    %v2095 = vsel %vm2089, %v2082, 920167782
    %v2096 = vsel %vm2088, %v2079, %v2095
    %v2097 = vsel %vm2087, %v2094, %v2096
    %v2098 = vsel %vm2086, %v2076, %v2079
    %v2099 = vsel %vm2089, %v2085, 1326507024
    %v2100 = vsel %vm2088, %v2082, %v2099
    %v2101 = vsel %vm2087, %v2098, %v2100
    %v2102 = vshll.u32 %v2062, 8
    %v2103 = vmul.u32.u64.compose %v2102, %v2101
    %v2104 = vextract.low.u32 %v2103
    %v2105 = vextract.high.u32 %v2103
    %v2106 = vmul.u32.u64.compose %v2102, %v2097
    %v2107 = vextract.low.u32 %v2106
    %v2108 = vextract.high.u32 %v2106
    %v2109 = vmul.u32 %v2102, %v2093
    %v2110 = vadd.s32 %v2105, %v2107
    %vm2111 = vc.u32 %v2105, %v2107
    %v2112 = vadd.s32 %v2108, 1
    %v2113 = vsel %vm2111, %v2112, %v2108
    %v2114 = vadd.s32 %v2109, %v2113
    %v2115 = vadd.s32 %v2114, 536870912
    %v2116 = vshrl.u32 %v2115, 30
    %v2117 = vshll.u32 %v2116, 30
    %v2118 = vsub.s32 %v2114, %v2117
    %vm2119 = vcmp.lt.s32.totalorder %v2118, 0
    %v2120 = vsub.s32 0, %v2118
    %v2121 = vsel %vm2119, %v2120, %v2118
    %v2122 = vclz %v2121
    %v2123 = vsub.s32 %v2122, 2
    %vm2124 = vcmp.gt.s32.totalorder 0, %v2123
    %v2125 = vsel %vm2124, 0, %v2123
    %v2126 = vsub.s32 32, %v2125
    %v2127 = vshll.u32 %v2118, %v2125
    %v2128 = vshrl.u32 %v2110, %v2126
    %v2129 = vor.u32 %v2127, %v2128
    %v2130 = vsub.s32 4294967266, %v2125
    %v2131 = vadd.s32 %v2130, 127
    %v2132 = vshll.u32 %v2131, 23
    %v2133 = vor.u32 4788187, %v2132
    %v2134 = vand.u32 2147483647, %v2133
    %v2136 = vcvt.s32.f32 %v2129
    %v2137 = vmul.f32 %v2136, %v2134
    %v2138 = vxor.u32 %v2137, 2147483648
    %v2139 = vsel %vm2056, %v2138, %v2137
    %v2140 = vsub.s32 4, %v2116
    %v2141 = vsel %vm2056, %v2140, %v2116
    %v2142 = vsel %vm2055, %v1948, %v2139
    %v2143 = vsel %vm2055, 0, %v2141
    %v2144 = vcosq.f32.pop %v2142
    %v2145 = vsinq.f32.pop %v2142
    %vm2146 = vweird.f32 %v1948
    %v2147 = vand.u32 %v2143, 3
    %vm2148 = vcmp.lt.s32.totalorder %v2147, 2
    %vm2149 = vcmp.eq.s32.totalorder %v2147, 0
    %v2150 = vxor.u32 %v2145, 2147483648
    %v2151 = vsel %vm2149, %v2144, %v2150
    %vm2152 = vcmp.eq.s32.totalorder %v2147, 2
    %v2153 = vxor.u32 %v2144, 2147483648
    %v2154 = vsel %vm2152, %v2153, %v2145
    %v2155 = vsel %vm2148, %v2151, %v2154
    %v2156 = vsel %vm2146, nan, %v2155
    %v2157 = vand.u32 2147483647, %v1949
    %vm2158 = vcmp.le.f32.partialorder %v2157, 0.7853982
    %vm2159 = vcmp.lt.s32.totalorder %v1949, 0
    %v2160 = vand.u32 %v1949, 2139095040
    %v2161 = vshrl.u32 %v2160, 23
    %v2162 = vsub.s32 %v2161, 127
    %v2163 = vand.u32 2147483647, %v1949
    %v2164 = vand.u32 %v2163, 8388607
    %v2165 = vor.u32 %v2164, 8388608
    %v2166 = vsub.s32 0, %v2165
    %v2167 = vadd.s32 %v2162, 1
    %vm2168 = vcmp.gt.s32.totalorder %v2167, 0
    %v2169 = vsel %vm2168, %v2167, 0
    %v2170 = vshrl.u32 %v2169, 5
    %v2171 = vand.u32 %v2169, 31
    %v2172 = vsub.s32 32, %v2171
    %v2173 = vshrl.u32 683565275, %v2172
    %v2174 = vshll.u32 683565275, %v2171
    %v2175 = vshrl.u32 2475754826, %v2172
    %v2176 = vor.u32 %v2174, %v2175
    %v2177 = vshll.u32 2475754826, %v2171
    %v2178 = vshrl.u32 2131351028, %v2172
    %v2179 = vor.u32 %v2177, %v2178
    %v2180 = vshll.u32 2131351028, %v2171
    %v2181 = vshrl.u32 2102212464, %v2172
    %v2182 = vor.u32 %v2180, %v2181
    %v2183 = vshll.u32 2102212464, %v2171
    %v2184 = vshrl.u32 920167782, %v2172
    %v2185 = vor.u32 %v2183, %v2184
    %v2186 = vshll.u32 920167782, %v2171
    %v2187 = vshrl.u32 1326507024, %v2172
    %v2188 = vor.u32 %v2186, %v2187
    %vm2189 = vcmp.lt.s32.totalorder %v2170, 1
    %vm2190 = vcmp.lt.s32.totalorder %v2170, 2
    %vm2191 = vcmp.lt.s32.totalorder %v2170, 3
    %vm2192 = vcmp.lt.s32.totalorder %v2170, 4
    %v2193 = vsel %vm2189, %v2173, %v2176
    %v2194 = vsel %vm2192, %v2182, 2102212464
    %v2195 = vsel %vm2191, %v2179, %v2194
    %v2196 = vsel %vm2190, %v2193, %v2195
    %v2197 = vsel %vm2189, %v2176, %v2179
    %v2198 = vsel %vm2192, %v2185, 920167782
    %v2199 = vsel %vm2191, %v2182, %v2198
    %v2200 = vsel %vm2190, %v2197, %v2199
    %v2201 = vsel %vm2189, %v2179, %v2182
    %v2202 = vsel %vm2192, %v2188, 1326507024
    %v2203 = vsel %vm2191, %v2185, %v2202
    %v2204 = vsel %vm2190, %v2201, %v2203
    %v2205 = vshll.u32 %v2165, 8
    %v2206 = vmul.u32.u64.compose %v2205, %v2204
    %v2207 = vextract.low.u32 %v2206
    %v2208 = vextract.high.u32 %v2206
    %v2209 = vmul.u32.u64.compose %v2205, %v2200
    %v2210 = vextract.low.u32 %v2209
    %v2211 = vextract.high.u32 %v2209
    %v2212 = vmul.u32 %v2205, %v2196
    %v2213 = vadd.s32 %v2208, %v2210
    %vm2214 = vc.u32 %v2208, %v2210
    %v2215 = vadd.s32 %v2211, 1
    %v2216 = vsel %vm2214, %v2215, %v2211
    %v2217 = vadd.s32 %v2212, %v2216
    %v2218 = vadd.s32 %v2217, 536870912
    %v2219 = vshrl.u32 %v2218, 30
    %v2220 = vshll.u32 %v2219, 30
    %v2221 = vsub.s32 %v2217, %v2220
    %vm2222 = vcmp.lt.s32.totalorder %v2221, 0
    %v2223 = vsub.s32 0, %v2221
    %v2224 = vsel %vm2222, %v2223, %v2221
    %v2225 = vclz %v2224
    %v2226 = vsub.s32 %v2225, 2
    %vm2227 = vcmp.gt.s32.totalorder 0, %v2226
    %v2228 = vsel %vm2227, 0, %v2226
    %v2229 = vsub.s32 32, %v2228
    %v2230 = vshll.u32 %v2221, %v2228
    %v2231 = vshrl.u32 %v2213, %v2229
    %v2232 = vor.u32 %v2230, %v2231
    %v2233 = vsub.s32 4294967266, %v2228
    %v2234 = vadd.s32 %v2233, 127
    %v2235 = vshll.u32 %v2234, 23
    %v2236 = vor.u32 4788187, %v2235
    %v2237 = vand.u32 2147483647, %v2236
    %v2239 = vcvt.s32.f32 %v2232
    %v2240 = vmul.f32 %v2239, %v2237
    %v2241 = vxor.u32 %v2240, 2147483648
    %v2242 = vsel %vm2159, %v2241, %v2240
    %v2243 = vsub.s32 4, %v2219
    %v2244 = vsel %vm2159, %v2243, %v2219
    %v2245 = vsel %vm2158, %v1949, %v2242
    %v2246 = vsel %vm2158, 0, %v2244
    %v2247 = vcosq.f32.pop %v2245
    %v2248 = vsinq.f32.pop %v2245
    %vm2249 = vweird.f32 %v1949
    %v2250 = vand.u32 %v2246, 3
    %vm2251 = vcmp.lt.s32.totalorder %v2250, 2
    %vm2252 = vcmp.eq.s32.totalorder %v2250, 0
    %v2253 = vxor.u32 %v2248, 2147483648
    %v2254 = vsel %vm2252, %v2247, %v2253
    %vm2255 = vcmp.eq.s32.totalorder %v2250, 2
    %v2256 = vxor.u32 %v2247, 2147483648
    %v2257 = vsel %vm2255, %v2256, %v2248
    %v2258 = vsel %vm2251, %v2254, %v2257
    %v2259 = vsel %vm2249, nan, %v2258
    %v2260 = vand.u32 2147483647, %v1950
    %vm2261 = vcmp.le.f32.partialorder %v2260, 0.7853982
    %vm2262 = vcmp.lt.s32.totalorder %v1950, 0
    %v2263 = vand.u32 %v1950, 2139095040
    %v2264 = vshrl.u32 %v2263, 23
    %v2265 = vsub.s32 %v2264, 127
    %v2266 = vand.u32 2147483647, %v1950
    %v2267 = vand.u32 %v2266, 8388607
    %v2268 = vor.u32 %v2267, 8388608
    %v2269 = vsub.s32 0, %v2268
    %v2270 = vadd.s32 %v2265, 1
    %vm2271 = vcmp.gt.s32.totalorder %v2270, 0
    %v2272 = vsel %vm2271, %v2270, 0
    %v2273 = vshrl.u32 %v2272, 5
    %v2274 = vand.u32 %v2272, 31
    %v2275 = vsub.s32 32, %v2274
    %v2276 = vshrl.u32 683565275, %v2275
    %v2277 = vshll.u32 683565275, %v2274
    %v2278 = vshrl.u32 2475754826, %v2275
    %v2279 = vor.u32 %v2277, %v2278
    %v2280 = vshll.u32 2475754826, %v2274
    %v2281 = vshrl.u32 2131351028, %v2275
    %v2282 = vor.u32 %v2280, %v2281
    %v2283 = vshll.u32 2131351028, %v2274
    %v2284 = vshrl.u32 2102212464, %v2275
    %v2285 = vor.u32 %v2283, %v2284
    %v2286 = vshll.u32 2102212464, %v2274
    %v2287 = vshrl.u32 920167782, %v2275
    %v2288 = vor.u32 %v2286, %v2287
    %v2289 = vshll.u32 920167782, %v2274
    %v2290 = vshrl.u32 1326507024, %v2275
    %v2291 = vor.u32 %v2289, %v2290
    %vm2292 = vcmp.lt.s32.totalorder %v2273, 1
    %vm2293 = vcmp.lt.s32.totalorder %v2273, 2
    %vm2294 = vcmp.lt.s32.totalorder %v2273, 3
    %vm2295 = vcmp.lt.s32.totalorder %v2273, 4
    %v2296 = vsel %vm2292, %v2276, %v2279
    %v2297 = vsel %vm2295, %v2285, 2102212464
    %v2298 = vsel %vm2294, %v2282, %v2297
    %v2299 = vsel %vm2293, %v2296, %v2298
    %v2300 = vsel %vm2292, %v2279, %v2282
    %v2301 = vsel %vm2295, %v2288, 920167782
    %v2302 = vsel %vm2294, %v2285, %v2301
    %v2303 = vsel %vm2293, %v2300, %v2302
    %v2304 = vsel %vm2292, %v2282, %v2285
    %v2305 = vsel %vm2295, %v2291, 1326507024
    %v2306 = vsel %vm2294, %v2288, %v2305
    %v2307 = vsel %vm2293, %v2304, %v2306
    %v2308 = vshll.u32 %v2268, 8
    %v2309 = vmul.u32.u64.compose %v2308, %v2307
    %v2310 = vextract.low.u32 %v2309
    %v2311 = vextract.high.u32 %v2309
    %v2312 = vmul.u32.u64.compose %v2308, %v2303
    %v2313 = vextract.low.u32 %v2312
    %v2314 = vextract.high.u32 %v2312
    %v2315 = vmul.u32 %v2308, %v2299
    %v2316 = vadd.s32 %v2311, %v2313
    %vm2317 = vc.u32 %v2311, %v2313
    %v2318 = vadd.s32 %v2314, 1
    %v2319 = vsel %vm2317, %v2318, %v2314
    %v2320 = vadd.s32 %v2315, %v2319
    %v2321 = vadd.s32 %v2320, 536870912
    %v2322 = vshrl.u32 %v2321, 30
    %v2323 = vshll.u32 %v2322, 30
    %v2324 = vsub.s32 %v2320, %v2323
    %vm2325 = vcmp.lt.s32.totalorder %v2324, 0
    %v2326 = vsub.s32 0, %v2324
    %v2327 = vsel %vm2325, %v2326, %v2324
    %v2328 = vclz %v2327
    %v2329 = vsub.s32 %v2328, 2
    %vm2330 = vcmp.gt.s32.totalorder 0, %v2329
    %v2331 = vsel %vm2330, 0, %v2329
    %v2332 = vsub.s32 32, %v2331
    %v2333 = vshll.u32 %v2324, %v2331
    %v2334 = vshrl.u32 %v2316, %v2332
    %v2335 = vor.u32 %v2333, %v2334
    %v2336 = vsub.s32 4294967266, %v2331
    %v2337 = vadd.s32 %v2336, 127
    %v2338 = vshll.u32 %v2337, 23
    %v2339 = vor.u32 4788187, %v2338
    %v2340 = vand.u32 2147483647, %v2339
    %v2342 = vcvt.s32.f32 %v2335
    %v2343 = vmul.f32 %v2342, %v2340
    %v2344 = vxor.u32 %v2343, 2147483648
    %v2345 = vsel %vm2262, %v2344, %v2343
    %v2346 = vsub.s32 4, %v2322
    %v2347 = vsel %vm2262, %v2346, %v2322
    %v2348 = vsel %vm2261, %v1950, %v2345
    %v2349 = vsel %vm2261, 0, %v2347
    %v2350 = vcosq.f32.pop %v2348
    %v2351 = vsinq.f32.pop %v2348
    %vm2352 = vweird.f32 %v1950
    %v2353 = vand.u32 %v2349, 3
    %vm2354 = vcmp.lt.s32.totalorder %v2353, 2
    %vm2355 = vcmp.eq.s32.totalorder %v2353, 0
    %v2356 = vxor.u32 %v2351, 2147483648
    %v2357 = vsel %vm2355, %v2350, %v2356
    %vm2358 = vcmp.eq.s32.totalorder %v2353, 2
    %v2359 = vxor.u32 %v2350, 2147483648
    %v2360 = vsel %vm2358, %v2359, %v2351
    %v2361 = vsel %vm2354, %v2357, %v2360
    %v2362 = vsel %vm2352, nan, %v2361
    %v2363 = vmul.f32 %v1938, %v2053
    %v2364 = vmul.f32 %v1939, %v2156
    %v2365 = vmul.f32 %v1940, %v2259
    %v2366 = vmul.f32 %v1941, %v2362
    %v2367 = vand.u32 2147483647, %v1947
    %vm2368 = vcmp.le.f32.partialorder %v2367, 0.7853982
    %vm2369 = vcmp.lt.s32.totalorder %v1947, 0
    %v2370 = vand.u32 %v1947, 2139095040
    %v2371 = vshrl.u32 %v2370, 23
    %v2372 = vsub.s32 %v2371, 127
    %v2373 = vand.u32 2147483647, %v1947
    %v2374 = vand.u32 %v2373, 8388607
    %v2375 = vor.u32 %v2374, 8388608
    %v2376 = vsub.s32 0, %v2375
    %v2377 = vadd.s32 %v2372, 1
    %vm2378 = vcmp.gt.s32.totalorder %v2377, 0
    %v2379 = vsel %vm2378, %v2377, 0
    %v2380 = vshrl.u32 %v2379, 5
    %v2381 = vand.u32 %v2379, 31
    %v2382 = vsub.s32 32, %v2381
    %v2383 = vshrl.u32 683565275, %v2382
    %v2384 = vshll.u32 683565275, %v2381
    %v2385 = vshrl.u32 2475754826, %v2382
    %v2386 = vor.u32 %v2384, %v2385
    %v2387 = vshll.u32 2475754826, %v2381
    %v2388 = vshrl.u32 2131351028, %v2382
    %v2389 = vor.u32 %v2387, %v2388
    %v2390 = vshll.u32 2131351028, %v2381
    %v2391 = vshrl.u32 2102212464, %v2382
    %v2392 = vor.u32 %v2390, %v2391
    %v2393 = vshll.u32 2102212464, %v2381
    %v2394 = vshrl.u32 920167782, %v2382
    %v2395 = vor.u32 %v2393, %v2394
    %v2396 = vshll.u32 920167782, %v2381
    %v2397 = vshrl.u32 1326507024, %v2382
    %v2398 = vor.u32 %v2396, %v2397
    %vm2399 = vcmp.lt.s32.totalorder %v2380, 1
    %vm2400 = vcmp.lt.s32.totalorder %v2380, 2
    %vm2401 = vcmp.lt.s32.totalorder %v2380, 3
    %vm2402 = vcmp.lt.s32.totalorder %v2380, 4
    %v2403 = vsel %vm2399, %v2383, %v2386
    %v2404 = vsel %vm2402, %v2392, 2102212464
    %v2405 = vsel %vm2401, %v2389, %v2404
    %v2406 = vsel %vm2400, %v2403, %v2405
    %v2407 = vsel %vm2399, %v2386, %v2389
    %v2408 = vsel %vm2402, %v2395, 920167782
    %v2409 = vsel %vm2401, %v2392, %v2408
    %v2410 = vsel %vm2400, %v2407, %v2409
    %v2411 = vsel %vm2399, %v2389, %v2392
    %v2412 = vsel %vm2402, %v2398, 1326507024
    %v2413 = vsel %vm2401, %v2395, %v2412
    %v2414 = vsel %vm2400, %v2411, %v2413
    %v2415 = vshll.u32 %v2375, 8
    %v2416 = vmul.u32.u64.compose %v2415, %v2414
    %v2417 = vextract.low.u32 %v2416
    %v2418 = vextract.high.u32 %v2416
    %v2419 = vmul.u32.u64.compose %v2415, %v2410
    %v2420 = vextract.low.u32 %v2419
    %v2421 = vextract.high.u32 %v2419
    %v2422 = vmul.u32 %v2415, %v2406
    %v2423 = vadd.s32 %v2418, %v2420
    %vm2424 = vc.u32 %v2418, %v2420
    %v2425 = vadd.s32 %v2421, 1
    %v2426 = vsel %vm2424, %v2425, %v2421
    %v2427 = vadd.s32 %v2422, %v2426
    %v2428 = vadd.s32 %v2427, 536870912
    %v2429 = vshrl.u32 %v2428, 30
    %v2430 = vshll.u32 %v2429, 30
    %v2431 = vsub.s32 %v2427, %v2430
    %vm2432 = vcmp.lt.s32.totalorder %v2431, 0
    %v2433 = vsub.s32 0, %v2431
    %v2434 = vsel %vm2432, %v2433, %v2431
    %v2435 = vclz %v2434
    %v2436 = vsub.s32 %v2435, 2
    %vm2437 = vcmp.gt.s32.totalorder 0, %v2436
    %v2438 = vsel %vm2437, 0, %v2436
    %v2439 = vsub.s32 32, %v2438
    %v2440 = vshll.u32 %v2431, %v2438
    %v2441 = vshrl.u32 %v2423, %v2439
    %v2442 = vor.u32 %v2440, %v2441
    %v2443 = vsub.s32 4294967266, %v2438
    %v2444 = vadd.s32 %v2443, 127
    %v2445 = vshll.u32 %v2444, 23
    %v2446 = vor.u32 4788187, %v2445
    %v2447 = vand.u32 2147483647, %v2446
    %v2449 = vcvt.s32.f32 %v2442
    %v2450 = vmul.f32 %v2449, %v2447
    %v2451 = vxor.u32 %v2450, 2147483648
    %v2452 = vsel %vm2369, %v2451, %v2450
    %v2453 = vsub.s32 4, %v2429
    %v2454 = vsel %vm2369, %v2453, %v2429
    %v2455 = vsel %vm2368, %v1947, %v2452
    %v2456 = vsel %vm2368, 0, %v2454
    %v2457 = vcosq.f32.pop %v2455
    %v2458 = vsinq.f32.pop %v2455
    %vm2459 = vweird.f32 %v1947
    %v2460 = vadd.s32 %v2456, 3
    %v2461 = vand.u32 %v2460, 3
    %vm2462 = vcmp.lt.s32.totalorder %v2461, 2
    %vm2463 = vcmp.eq.s32.totalorder %v2461, 0
    %v2464 = vxor.u32 %v2458, 2147483648
    %v2465 = vsel %vm2463, %v2457, %v2464
    %vm2466 = vcmp.eq.s32.totalorder %v2461, 2
    %v2467 = vxor.u32 %v2457, 2147483648
    %v2468 = vsel %vm2466, %v2467, %v2458
    %v2469 = vsel %vm2462, %v2465, %v2468
    %v2470 = vsel %vm2459, nan, %v2469
    %v2471 = vand.u32 2147483647, %v1948
    %vm2472 = vcmp.le.f32.partialorder %v2471, 0.7853982
    %vm2473 = vcmp.lt.s32.totalorder %v1948, 0
    %v2474 = vand.u32 %v1948, 2139095040
    %v2475 = vshrl.u32 %v2474, 23
    %v2476 = vsub.s32 %v2475, 127
    %v2477 = vand.u32 2147483647, %v1948
    %v2478 = vand.u32 %v2477, 8388607
    %v2479 = vor.u32 %v2478, 8388608
    %v2480 = vsub.s32 0, %v2479
    %v2481 = vadd.s32 %v2476, 1
    %vm2482 = vcmp.gt.s32.totalorder %v2481, 0
    %v2483 = vsel %vm2482, %v2481, 0
    %v2484 = vshrl.u32 %v2483, 5
    %v2485 = vand.u32 %v2483, 31
    %v2486 = vsub.s32 32, %v2485
    %v2487 = vshrl.u32 683565275, %v2486
    %v2488 = vshll.u32 683565275, %v2485
    %v2489 = vshrl.u32 2475754826, %v2486
    %v2490 = vor.u32 %v2488, %v2489
    %v2491 = vshll.u32 2475754826, %v2485
    %v2492 = vshrl.u32 2131351028, %v2486
    %v2493 = vor.u32 %v2491, %v2492
    %v2494 = vshll.u32 2131351028, %v2485
    %v2495 = vshrl.u32 2102212464, %v2486
    %v2496 = vor.u32 %v2494, %v2495
    %v2497 = vshll.u32 2102212464, %v2485
    %v2498 = vshrl.u32 920167782, %v2486
    %v2499 = vor.u32 %v2497, %v2498
    %v2500 = vshll.u32 920167782, %v2485
    %v2501 = vshrl.u32 1326507024, %v2486
    %v2502 = vor.u32 %v2500, %v2501
    %vm2503 = vcmp.lt.s32.totalorder %v2484, 1
    %vm2504 = vcmp.lt.s32.totalorder %v2484, 2
    %vm2505 = vcmp.lt.s32.totalorder %v2484, 3
    %vm2506 = vcmp.lt.s32.totalorder %v2484, 4
    %v2507 = vsel %vm2503, %v2487, %v2490
    %v2508 = vsel %vm2506, %v2496, 2102212464
    %v2509 = vsel %vm2505, %v2493, %v2508
    %v2510 = vsel %vm2504, %v2507, %v2509
    %v2511 = vsel %vm2503, %v2490, %v2493
    %v2512 = vsel %vm2506, %v2499, 920167782
    %v2513 = vsel %vm2505, %v2496, %v2512
    %v2514 = vsel %vm2504, %v2511, %v2513
    %v2515 = vsel %vm2503, %v2493, %v2496
    %v2516 = vsel %vm2506, %v2502, 1326507024
    %v2517 = vsel %vm2505, %v2499, %v2516
    %v2518 = vsel %vm2504, %v2515, %v2517
    %v2519 = vshll.u32 %v2479, 8
    %v2520 = vmul.u32.u64.compose %v2519, %v2518
    %v2521 = vextract.low.u32 %v2520
    %v2522 = vextract.high.u32 %v2520
    %v2523 = vmul.u32.u64.compose %v2519, %v2514
    %v2524 = vextract.low.u32 %v2523
    %v2525 = vextract.high.u32 %v2523
    %v2526 = vmul.u32 %v2519, %v2510
    %v2527 = vadd.s32 %v2522, %v2524
    %vm2528 = vc.u32 %v2522, %v2524
    %v2529 = vadd.s32 %v2525, 1
    %v2530 = vsel %vm2528, %v2529, %v2525
    %v2531 = vadd.s32 %v2526, %v2530
    %v2532 = vadd.s32 %v2531, 536870912
    %v2533 = vshrl.u32 %v2532, 30
    %v2534 = vshll.u32 %v2533, 30
    %v2535 = vsub.s32 %v2531, %v2534
    %vm2536 = vcmp.lt.s32.totalorder %v2535, 0
    %v2537 = vsub.s32 0, %v2535
    %v2538 = vsel %vm2536, %v2537, %v2535
    %v2539 = vclz %v2538
    %v2540 = vsub.s32 %v2539, 2
    %vm2541 = vcmp.gt.s32.totalorder 0, %v2540
    %v2542 = vsel %vm2541, 0, %v2540
    %v2543 = vsub.s32 32, %v2542
    %v2544 = vshll.u32 %v2535, %v2542
    %v2545 = vshrl.u32 %v2527, %v2543
    %v2546 = vor.u32 %v2544, %v2545
    %v2547 = vsub.s32 4294967266, %v2542
    %v2548 = vadd.s32 %v2547, 127
    %v2549 = vshll.u32 %v2548, 23
    %v2550 = vor.u32 4788187, %v2549
    %v2551 = vand.u32 2147483647, %v2550
    %v2553 = vcvt.s32.f32 %v2546
    %v2554 = vmul.f32 %v2553, %v2551
    %v2555 = vxor.u32 %v2554, 2147483648
    %v2556 = vsel %vm2473, %v2555, %v2554
    %v2557 = vsub.s32 4, %v2533
    %v2558 = vsel %vm2473, %v2557, %v2533
    %v2559 = vsel %vm2472, %v1948, %v2556
    %v2560 = vsel %vm2472, 0, %v2558
    %v2561 = vcosq.f32.pop %v2559
    %v2562 = vsinq.f32.pop %v2559
    %vm2563 = vweird.f32 %v1948
    %v2564 = vadd.s32 %v2560, 3
    %v2565 = vand.u32 %v2564, 3
    %vm2566 = vcmp.lt.s32.totalorder %v2565, 2
    %vm2567 = vcmp.eq.s32.totalorder %v2565, 0
    %v2568 = vxor.u32 %v2562, 2147483648
    %v2569 = vsel %vm2567, %v2561, %v2568
    %vm2570 = vcmp.eq.s32.totalorder %v2565, 2
    %v2571 = vxor.u32 %v2561, 2147483648
    %v2572 = vsel %vm2570, %v2571, %v2562
    %v2573 = vsel %vm2566, %v2569, %v2572
    %v2574 = vsel %vm2563, nan, %v2573
    %v2575 = vand.u32 2147483647, %v1949
    %vm2576 = vcmp.le.f32.partialorder %v2575, 0.7853982
    %vm2577 = vcmp.lt.s32.totalorder %v1949, 0
    %v2578 = vand.u32 %v1949, 2139095040
    %v2579 = vshrl.u32 %v2578, 23
    %v2580 = vsub.s32 %v2579, 127
    %v2581 = vand.u32 2147483647, %v1949
    %v2582 = vand.u32 %v2581, 8388607
    %v2583 = vor.u32 %v2582, 8388608
    %v2584 = vsub.s32 0, %v2583
    %v2585 = vadd.s32 %v2580, 1
    %vm2586 = vcmp.gt.s32.totalorder %v2585, 0
    %v2587 = vsel %vm2586, %v2585, 0
    %v2588 = vshrl.u32 %v2587, 5
    %v2589 = vand.u32 %v2587, 31
    %v2590 = vsub.s32 32, %v2589
    %v2591 = vshrl.u32 683565275, %v2590
    %v2592 = vshll.u32 683565275, %v2589
    %v2593 = vshrl.u32 2475754826, %v2590
    %v2594 = vor.u32 %v2592, %v2593
    %v2595 = vshll.u32 2475754826, %v2589
    %v2596 = vshrl.u32 2131351028, %v2590
    %v2597 = vor.u32 %v2595, %v2596
    %v2598 = vshll.u32 2131351028, %v2589
    %v2599 = vshrl.u32 2102212464, %v2590
    %v2600 = vor.u32 %v2598, %v2599
    %v2601 = vshll.u32 2102212464, %v2589
    %v2602 = vshrl.u32 920167782, %v2590
    %v2603 = vor.u32 %v2601, %v2602
    %v2604 = vshll.u32 920167782, %v2589
    %v2605 = vshrl.u32 1326507024, %v2590
    %v2606 = vor.u32 %v2604, %v2605
    %vm2607 = vcmp.lt.s32.totalorder %v2588, 1
    %vm2608 = vcmp.lt.s32.totalorder %v2588, 2
    %vm2609 = vcmp.lt.s32.totalorder %v2588, 3
    %vm2610 = vcmp.lt.s32.totalorder %v2588, 4
    %v2611 = vsel %vm2607, %v2591, %v2594
    %v2612 = vsel %vm2610, %v2600, 2102212464
    %v2613 = vsel %vm2609, %v2597, %v2612
    %v2614 = vsel %vm2608, %v2611, %v2613
    %v2615 = vsel %vm2607, %v2594, %v2597
    %v2616 = vsel %vm2610, %v2603, 920167782
    %v2617 = vsel %vm2609, %v2600, %v2616
    %v2618 = vsel %vm2608, %v2615, %v2617
    %v2619 = vsel %vm2607, %v2597, %v2600
    %v2620 = vsel %vm2610, %v2606, 1326507024
    %v2621 = vsel %vm2609, %v2603, %v2620
    %v2622 = vsel %vm2608, %v2619, %v2621
    %v2623 = vshll.u32 %v2583, 8
    %v2624 = vmul.u32.u64.compose %v2623, %v2622
    %v2625 = vextract.low.u32 %v2624
    %v2626 = vextract.high.u32 %v2624
    %v2627 = vmul.u32.u64.compose %v2623, %v2618
    %v2628 = vextract.low.u32 %v2627
    %v2629 = vextract.high.u32 %v2627
    %v2630 = vmul.u32 %v2623, %v2614
    %v2631 = vadd.s32 %v2626, %v2628
    %vm2632 = vc.u32 %v2626, %v2628
    %v2633 = vadd.s32 %v2629, 1
    %v2634 = vsel %vm2632, %v2633, %v2629
    %v2635 = vadd.s32 %v2630, %v2634
    %v2636 = vadd.s32 %v2635, 536870912
    %v2637 = vshrl.u32 %v2636, 30
    %v2638 = vshll.u32 %v2637, 30
    %v2639 = vsub.s32 %v2635, %v2638
    %vm2640 = vcmp.lt.s32.totalorder %v2639, 0
    %v2641 = vsub.s32 0, %v2639
    %v2642 = vsel %vm2640, %v2641, %v2639
    %v2643 = vclz %v2642
    %v2644 = vsub.s32 %v2643, 2
    %vm2645 = vcmp.gt.s32.totalorder 0, %v2644
    %v2646 = vsel %vm2645, 0, %v2644
    %v2647 = vsub.s32 32, %v2646
    %v2648 = vshll.u32 %v2639, %v2646
    %v2649 = vshrl.u32 %v2631, %v2647
    %v2650 = vor.u32 %v2648, %v2649
    %v2651 = vsub.s32 4294967266, %v2646
    %v2652 = vadd.s32 %v2651, 127
    %v2653 = vshll.u32 %v2652, 23
    %v2654 = vor.u32 4788187, %v2653
    %v2655 = vand.u32 2147483647, %v2654
    %v2657 = vcvt.s32.f32 %v2650
    %v2658 = vmul.f32 %v2657, %v2655
    %v2659 = vxor.u32 %v2658, 2147483648
    %v2660 = vsel %vm2577, %v2659, %v2658
    %v2661 = vsub.s32 4, %v2637
    %v2662 = vsel %vm2577, %v2661, %v2637
    %v2663 = vsel %vm2576, %v1949, %v2660
    %v2664 = vsel %vm2576, 0, %v2662
    %v2665 = vcosq.f32.pop %v2663
    %v2666 = vsinq.f32.pop %v2663
    %vm2667 = vweird.f32 %v1949
    %v2668 = vadd.s32 %v2664, 3
    %v2669 = vand.u32 %v2668, 3
    %vm2670 = vcmp.lt.s32.totalorder %v2669, 2
    %vm2671 = vcmp.eq.s32.totalorder %v2669, 0
    %v2672 = vxor.u32 %v2666, 2147483648
    %v2673 = vsel %vm2671, %v2665, %v2672
    %vm2674 = vcmp.eq.s32.totalorder %v2669, 2
    %v2675 = vxor.u32 %v2665, 2147483648
    %v2676 = vsel %vm2674, %v2675, %v2666
    %v2677 = vsel %vm2670, %v2673, %v2676
    %v2678 = vsel %vm2667, nan, %v2677
    %v2679 = vand.u32 2147483647, %v1950
    %vm2680 = vcmp.le.f32.partialorder %v2679, 0.7853982
    %vm2681 = vcmp.lt.s32.totalorder %v1950, 0
    %v2682 = vand.u32 %v1950, 2139095040
    %v2683 = vshrl.u32 %v2682, 23
    %v2684 = vsub.s32 %v2683, 127
    %v2685 = vand.u32 2147483647, %v1950
    %v2686 = vand.u32 %v2685, 8388607
    %v2687 = vor.u32 %v2686, 8388608
    %v2688 = vsub.s32 0, %v2687
    %v2689 = vadd.s32 %v2684, 1
    %vm2690 = vcmp.gt.s32.totalorder %v2689, 0
    %v2691 = vsel %vm2690, %v2689, 0
    %v2692 = vshrl.u32 %v2691, 5
    %v2693 = vand.u32 %v2691, 31
    %v2694 = vsub.s32 32, %v2693
    %v2695 = vshrl.u32 683565275, %v2694
    %v2696 = vshll.u32 683565275, %v2693
    %v2697 = vshrl.u32 2475754826, %v2694
    %v2698 = vor.u32 %v2696, %v2697
    %v2699 = vshll.u32 2475754826, %v2693
    %v2700 = vshrl.u32 2131351028, %v2694
    %v2701 = vor.u32 %v2699, %v2700
    %v2702 = vshll.u32 2131351028, %v2693
    %v2703 = vshrl.u32 2102212464, %v2694
    %v2704 = vor.u32 %v2702, %v2703
    %v2705 = vshll.u32 2102212464, %v2693
    %v2706 = vshrl.u32 920167782, %v2694
    %v2707 = vor.u32 %v2705, %v2706
    %v2708 = vshll.u32 920167782, %v2693
    %v2709 = vshrl.u32 1326507024, %v2694
    %v2710 = vor.u32 %v2708, %v2709
    %vm2711 = vcmp.lt.s32.totalorder %v2692, 1
    %vm2712 = vcmp.lt.s32.totalorder %v2692, 2
    %vm2713 = vcmp.lt.s32.totalorder %v2692, 3
    %vm2714 = vcmp.lt.s32.totalorder %v2692, 4
    %v2715 = vsel %vm2711, %v2695, %v2698
    %v2716 = vsel %vm2714, %v2704, 2102212464
    %v2717 = vsel %vm2713, %v2701, %v2716
    %v2718 = vsel %vm2712, %v2715, %v2717
    %v2719 = vsel %vm2711, %v2698, %v2701
    %v2720 = vsel %vm2714, %v2707, 920167782
    %v2721 = vsel %vm2713, %v2704, %v2720
    %v2722 = vsel %vm2712, %v2719, %v2721
    %v2723 = vsel %vm2711, %v2701, %v2704
    %v2724 = vsel %vm2714, %v2710, 1326507024
    %v2725 = vsel %vm2713, %v2707, %v2724
    %v2726 = vsel %vm2712, %v2723, %v2725
    %v2727 = vshll.u32 %v2687, 8
    %v2728 = vmul.u32.u64.compose %v2727, %v2726
    %v2729 = vextract.low.u32 %v2728
    %v2730 = vextract.high.u32 %v2728
    %v2731 = vmul.u32.u64.compose %v2727, %v2722
    %v2732 = vextract.low.u32 %v2731
    %v2733 = vextract.high.u32 %v2731
    %v2734 = vmul.u32 %v2727, %v2718
    %v2735 = vadd.s32 %v2730, %v2732
    %vm2736 = vc.u32 %v2730, %v2732
    %v2737 = vadd.s32 %v2733, 1
    %v2738 = vsel %vm2736, %v2737, %v2733
    %v2739 = vadd.s32 %v2734, %v2738
    %v2740 = vadd.s32 %v2739, 536870912
    %v2741 = vshrl.u32 %v2740, 30
    %v2742 = vshll.u32 %v2741, 30
    %v2743 = vsub.s32 %v2739, %v2742
    %vm2744 = vcmp.lt.s32.totalorder %v2743, 0
    %v2745 = vsub.s32 0, %v2743
    %v2746 = vsel %vm2744, %v2745, %v2743
    %v2747 = vclz %v2746
    %v2748 = vsub.s32 %v2747, 2
    %vm2749 = vcmp.gt.s32.totalorder 0, %v2748
    %v2750 = vsel %vm2749, 0, %v2748
    %v2751 = vsub.s32 32, %v2750
    %v2752 = vshll.u32 %v2743, %v2750
    %v2753 = vshrl.u32 %v2735, %v2751
    %v2754 = vor.u32 %v2752, %v2753
    %v2755 = vsub.s32 4294967266, %v2750
    %v2756 = vadd.s32 %v2755, 127
    %v2757 = vshll.u32 %v2756, 23
    %v2758 = vor.u32 4788187, %v2757
    %v2759 = vand.u32 2147483647, %v2758
    %v2761 = vcvt.s32.f32 %v2754
    %v2762 = vmul.f32 %v2761, %v2759
    %v2763 = vxor.u32 %v2762, 2147483648
    %v2764 = vsel %vm2681, %v2763, %v2762
    %v2765 = vsub.s32 4, %v2741
    %v2766 = vsel %vm2681, %v2765, %v2741
    %v2767 = vsel %vm2680, %v1950, %v2764
    %v2768 = vsel %vm2680, 0, %v2766
    %v2769 = vcosq.f32.pop %v2767
    %v2770 = vsinq.f32.pop %v2767
    %vm2771 = vweird.f32 %v1950
    %v2772 = vadd.s32 %v2768, 3
    %v2773 = vand.u32 %v2772, 3
    %vm2774 = vcmp.lt.s32.totalorder %v2773, 2
    %vm2775 = vcmp.eq.s32.totalorder %v2773, 0
    %v2776 = vxor.u32 %v2770, 2147483648
    %v2777 = vsel %vm2775, %v2769, %v2776
    %vm2778 = vcmp.eq.s32.totalorder %v2773, 2
    %v2779 = vxor.u32 %v2769, 2147483648
    %v2780 = vsel %vm2778, %v2779, %v2770
    %v2781 = vsel %vm2774, %v2777, %v2780
    %v2782 = vsel %vm2771, nan, %v2781
    %v2783 = vmul.f32 %v1942, %v2470
    %v2784 = vmul.f32 %v1943, %v2574
    %v2785 = vmul.f32 %v1944, %v2678
    %v2786 = vmul.f32 %v1945, %v2782
    %v2787 = vadd.f32 %v2363, %v2783
    %v2788 = vadd.f32 %v2364, %v2784
    %v2789 = vadd.f32 %v2365, %v2785
    %v2790 = vadd.f32 %v2366, %v2786
    %v2791 = vmul.f32 %v1938, %v1938
    %v2792 = vmul.f32 %v1939, %v1939
    %v2793 = vmul.f32 %v1940, %v1940
    %v2794 = vmul.f32 %v1941, %v1941
    %v2795 = vmul.f32 %v1942, %v1942
    %v2796 = vmul.f32 %v1943, %v1943
    %v2797 = vmul.f32 %v1944, %v1944
    %v2798 = vmul.f32 %v1945, %v1945
    %v2799 = vadd.f32 %v2791, %v2795
    %v2800 = vadd.f32 %v2792, %v2796
    %v2801 = vadd.f32 %v2793, %v2797
    %v2802 = vadd.f32 %v2794, %v2798
    %v2803 = vadd.f32 %v2799, 1e-30
    %v2804 = vadd.f32 %v2800, 1e-30
    %v2805 = vadd.f32 %v2801, 1e-30
    %v2806 = vadd.f32 %v2802, 1e-30
    %v2807 = vrsqrt.pop %v2803
    %v2808 = vrsqrt.pop %v2804
    %v2809 = vrsqrt.pop %v2805
    %v2810 = vrsqrt.pop %v2806
    %v2811 = vmul.f32 %v2787, %v2807
    %v2812 = vmul.f32 %v2788, %v2808
    %v2813 = vmul.f32 %v2789, %v2809
    %v2814 = vmul.f32 %v2790, %v2810
    %v2815 = vsub.f32 1.0, %v2811
    %v2816 = vsub.f32 1.0, %v2812
    %v2817 = vsub.f32 1.0, %v2813
    %v2818 = vsub.f32 1.0, %v2814
    %v2819 = vadd.f32 %v1906, %v2815
    %v2820 = vadd.f32 %v1907, %v2816
    %v2821 = vadd.f32 %v1908, %v2817
    %v2822 = vadd.f32 %v1909, %v2818
    %s2823 = sadd.s32 %s74, 0
    %v2824 = vstv %s2823
    %v2825 = vadd.s32 %v2824, %v76
    %v2826 = vadd.s32 %v2824, %v77
    %v2827 = vadd.s32 %v2824, %v78
    %v2828 = vadd.s32 %v2824, %v79
    %v2829 = vmul.u32 %v2825, 128
    %v2830 = vmul.u32 %v2826, 128
    %v2831 = vmul.u32 %v2827, 128
    %v2832 = vmul.u32 %v2828, 128
    %v2833 = vadd.s32 %v2829, %v81
    %v2834 = vadd.s32 %v2830, %v81
    %v2835 = vadd.s32 %v2831, %v81
    %v2836 = vadd.s32 %v2832, %v81
    %v2837 = vstv %s72
    %vm2838 = vcmp.lt.s32.totalorder %v2833, %v2837
    %vm2839 = vcmp.lt.s32.totalorder %v2834, %v2837
    %vm2840 = vcmp.lt.s32.totalorder %v2835, %v2837
    %vm2841 = vcmp.lt.s32.totalorder %v2836, %v2837
    %v2842 = vsel %vm2838, %v2819, 0.0
    %v2843 = vsel %vm2839, %v2820, 0.0
    %v2844 = vsel %vm2840, %v2821, 0.0
    %v2845 = vsel %vm2841, %v2822, 0.0
    %v2846 = vadd.f32 %v2842, 0.0
    %v2847 = vadd.f32 %v2843, 0.0
    %v2848 = vadd.f32 %v2844, 0.0
    %v2849 = vadd.f32 %v2845, 0.0
    %v2850 = vld [vmem:[#allocation2] sm:$0xff]
    %v2851 = vld [vmem:[#allocation2 + $0x8] sm:$0xff]
    %v2852 = vld [vmem:[#allocation2 + $0x10] sm:$0xff]
    %v2853 = vld [vmem:[#allocation2 + $0x18] sm:$0xff]
    %v2854 = vadd.f32 %v2850, %v2846
    %v2855 = vadd.f32 %v2851, %v2847
    %v2856 = vadd.f32 %v2852, %v2848
    %v2857 = vadd.f32 %v2853, %v2849
    %2858 = vst [vmem:[#allocation2] sm:$0xff] %v2854
    %2859 = vst [vmem:[#allocation2 + $0x8] sm:$0xff] %v2855
    %2860 = vst [vmem:[#allocation2 + $0x10] sm:$0xff] %v2856
    %2861 = vst [vmem:[#allocation2 + $0x18] sm:$0xff] %v2857
    // Predicated region
    $region22: #{tpu_custom_call.1} parent=1 // pred_check
      %p2862 = pneg %p61
    $region23: #{tpu_custom_call.1} parent=1 // pred_check_branch
      %2864 = sbr.rel (%p2862) target = $region25
    $region24: #{tpu_custom_call.1} parent=1 // pred_region
      %v2865 = vld [vmem:[#allocation2] sm:$0xff]
      %v2866 = vld [vmem:[#allocation2 + $0x8] sm:$0xff]
      %v2867 = vld [vmem:[#allocation2 + $0x10] sm:$0xff]
      %v2868 = vld [vmem:[#allocation2 + $0x18] sm:$0xff]
      %v2869 = vadd.f32 %v2865, %v2866
      %v2870 = vadd.f32 %v2869, %v2867
      %v2871 = vadd.f32 %v2870, %v2868
      %v2872 = vrot.slane %v2871, 4
      %v2873 = vadd.f32 %v2871, %v2872
      %v2874 = vrot.slane %v2873, 2
      %v2875 = vadd.f32 %v2873, %v2874
      %v2876 = vrot.slane %v2875, 1
      %v2877 = vadd.f32 %v2875, %v2876
      %2878 = vst [vmem:[#allocation11] sm:$0x1] %v2877
    $region25: #{tpu_custom_call.1} parent=1 // pred_fallthru
      _
    // Predicated region
    $region26: #{tpu_custom_call.1} parent=1 // pred_check
      _
    $region27: #{tpu_custom_call.1} parent=1 // pred_check_branch
      %2880 = sbr.rel (0) target = $region29
    $region28: #{tpu_custom_call.1} parent=1 // pred_region
      %s2882 = ssub.s32 16, 16
      %2883 = vsyncadd [#allocation8], %s2882
      %s2885 = sshll.u32 [#allocation11], 4
      %s2886 = int_to_ptr.vmem [resolvable:$true] %s2885
      %2888 = dma.vmem_to_hbm [thread:$0]  %s2886, 16, %s4, [#allocation8]
    $region29: #{tpu_custom_call.1} parent=1 // pred_fallthru
      _
    // Predicated region
    $region30: #{tpu_custom_call.1} parent=1 // pred_check
      _
    $region31: #{tpu_custom_call.1} parent=1 // pred_check_branch
      %2890 = sbr.rel (0) target = $region33
    $region32: #{tpu_custom_call.1} parent=1 // pred_region
      %2891 = dma.done [#allocation8], 16
    $region33: #{tpu_custom_call.1} parent=1 // pred_fallthru
      _
    %2892 = vsyncpa [#allocation7], 1
    %2893 = vsyncpa [#allocation10], 1
    %2894 = vsyncpa [#allocation8], 1

</llo_original>
